<compile_context>
chip_gen: v7x
topology: tpu7x:2x2x1
jax: 0.10.0
libtpu: 0.0.40
codegen_flags: <defaults>
</compile_context>

<pallas_src>
import math
import functools

import jax
import jax.numpy as jnp
from jax import lax
from jax.experimental import pallas as pl
from jax.experimental.pallas import tpu as pltpu


LN_EPS = 1e-5

_PARAM_ORDER = ("ln1_g", "ln1_b", "wqkv", "bqkv", "wo", "bo",
                "ln2_g", "ln2_b", "w1", "b1", "w2", "b2")


def _layernorm(x, gamma, beta):
    # x: (R, D) fp32 ; gamma/beta: (1, D) fp32
    mu = jnp.mean(x, axis=-1, keepdims=True)
    xc = x - mu
    var = jnp.mean(xc * xc, axis=-1, keepdims=True)
    inv = lax.rsqrt(var + LN_EPS)
    return xc * inv * gamma + beta


def _vmem_capacity_bytes():
    try:
        return int(pltpu.get_tpu_info().vmem_capacity_bytes)
    except Exception:
        return 64 * 1024 * 1024   # conservative fallback (v7x size)


def _transformer_kernel(x_ref,
                        ln1_g_ref, ln1_b_ref,
                        wqkv_ref, bqkv_ref,
                        wo_ref, bo_ref,
                        ln2_g_ref, ln2_b_ref,
                        w1_ref, b1_ref,
                        w2_ref, b2_ref,
                        o_ref,
                        x_scr, attn_scr, xn2_scr, acc_scr,
                        *, d_model, n_head, b_tile, seq_len):
    """One (batch-tile t, layer l, mlp-chunk c) grid step.

    Residual stream carried in x_scr (VMEM) across (l, c); attention + LN2 run
    only at c == 0, the MLP hidden dim is accumulated chunk-by-chunk in acc_scr.
    """
    D = d_model
    H = n_head
    hd = D // H
    BT = b_tile
    L = seq_len

    layer = pl.program_id(1)
    chunk = pl.program_id(2)
    n_layers = pl.num_programs(1)
    n_chunks = pl.num_programs(2)

    first_chunk = chunk == 0
    last_chunk = chunk == n_chunks - 1

    # Load the residual stream into VMEM scratch once per batch tile.
    @pl.when(jnp.logical_and(layer == 0, first_chunk))
    def _():
        x_scr[...] = x_ref[0]

    # ---- attention branch + LN2 (once per layer, at the first MLP chunk) ---------
    @pl.when(first_chunk)
    def _():
        x = x_scr[...]                                        # (BT*L, D) fp32
        xn = _layernorm(x, ln1_g_ref[0], ln1_b_ref[0])
        qkv = jnp.dot(xn.astype(jnp.bfloat16), wqkv_ref[0],   # bf16 x bf16 -> f32 acc
                      preferred_element_type=jnp.float32) + bqkv_ref[0]   # (BT*L, 3D)
        # 1/sqrt(head_dim) is pre-folded into the Q columns of wqkv / bqkv.
        qkv3 = qkv.reshape(BT, L, 3 * D)
        q3 = qkv3[:, :, 0 * D:1 * D].astype(jnp.bfloat16)
        k3 = qkv3[:, :, 1 * D:2 * D].astype(jnp.bfloat16)
        v3 = qkv3[:, :, 2 * D:3 * D].astype(jnp.bfloat16)

        for h in range(H):                                    # static head loop
            sl = slice(h * hd, (h + 1) * hd)
            # S = Q K^T batched over the batch tile; contraction over head_dim.
            s = jnp.einsum("bqd,bkd->bqk", q3[:, :, sl], k3[:, :, sl],
                           preferred_element_type=jnp.float32)        # (BT, L, L)
            s = s - jnp.max(s, axis=-1, keepdims=True)
            p = jnp.exp(s)
            inv = pl.reciprocal(jnp.sum(p, axis=-1, keepdims=True), approx=True)
            p_b = (p * inv).astype(jnp.bfloat16)
            attn_scr[:, :, sl] = jnp.einsum("bqk,bkd->bqd", p_b, v3[:, :, sl],
                                            preferred_element_type=jnp.float32)

        attn = attn_scr[...].reshape(BT * L, D)               # head-contiguous slab
        attn = jnp.dot(attn.astype(jnp.bfloat16), wo_ref[0],
                       preferred_element_type=jnp.float32) + bo_ref[0]
        x1 = x + attn                                         # residual add (fp32)

        xn2 = _layernorm(x1, ln2_g_ref[0], ln2_b_ref[0])
        xn2_scr[...] = xn2.astype(jnp.bfloat16)               # reused by every chunk
        acc_scr[...] = x1 + b2_ref[0]                         # c_proj bias added once

    # ---- MLP chunk (every grid step): this slice of the 4D hidden dim ------------
    hmid = jnp.dot(xn2_scr[...], w1_ref[0],
                   preferred_element_type=jnp.float32) + b1_ref[0]     # (BT*L, 4D/C)
    hmid = hmid * jax.nn.sigmoid(1.702 * hmid)                # QuickGELU (fp32)
    acc_scr[...] += jnp.dot(hmid.astype(jnp.bfloat16), w2_ref[0],
                            preferred_element_type=jnp.float32)

    # ---- end of layer: carry residual; end of last layer: emit the output --------
    @pl.when(last_chunk)
    def _():
        x_scr[...] = acc_scr[...]

    @pl.when(jnp.logical_and(last_chunk, layer == n_layers - 1))
    def _():
        o_ref[0] = acc_scr[...]


def transformer_pallas(x_bld, params, *, d_model, n_head,
                       b_tile=None, mlp_chunks=None, max_b_tile=8):
    """x_bld: (B, L, D) fp32 -> (B, L, D) fp32; one fused pallas_call for ALL layers."""
    B, L, D = x_bld.shape
    assert D == d_model and D % n_head == 0
    LAYERS = params["wqkv"].shape[0]
    D4 = 4 * D

    weight_args = [params[k] for k in _PARAM_ORDER]
    per_layer_bytes = {k: (int(v.size) // LAYERS) * v.dtype.itemsize
                       for k, v in zip(_PARAM_ORDER, weight_args)}
    fixed_w = sum(per_layer_bytes[k] for k in
                  ("ln1_g", "ln1_b", "wqkv", "bqkv", "wo", "bo",
                   "ln2_g", "ln2_b", "b2"))
    chunked_w = sum(per_layer_bytes[k] for k in ("w1", "b1", "w2"))

    vmem_cap = _vmem_capacity_bytes()
    budget = vmem_cap - (8 << 20)

    def est(bt, c):
        # Tightened live-set estimate (drives B_TILE / MLP_CHUNKS choice + vmem limit).
        rows = bt * L
        io = 4 * rows * D * 4                          # x + o blocks, double-buffered
        w = 2 * (fixed_w + chunked_w // c)             # double-buffered weights
        scr = rows * D * (4 + 4 + 2 + 4)               # x_scr, attn_scr, xn2_scr, acc_scr
        act = rows * (3 * D * 4 + 3 * D * 2 + (D4 // c) * 4 + D * 4)  # qkv,q/k/v,hmid,attn
        act += 2 * rows * L * 4                        # one live (BT,L,L) score + prob tile
        return io + w + scr + act + (2 << 20)

    c_legal = [c for c in (1, 2, 4, 8)
               if D4 % c == 0 and (c == 1 or (D4 // c) % 128 == 0)]
    if b_tile is None or mlp_chunks is None:
        bt_candidates = ([b_tile] if b_tile is not None else
                         [d for d in range(min(B, max_b_tile), 0, -1) if B % d == 0])
        c_candidates = [mlp_chunks] if mlp_chunks is not None else c_legal
        chosen = None
        for bt in bt_candidates:                       # prefer max batch reuse,
            for c in c_candidates:                     # then min MLP chunking
                if est(bt, c) <= budget:
                    chosen = (bt, c)
                    break
            if chosen is not None:
                break
        if chosen is None:
            chosen = (bt_candidates[-1], c_candidates[-1])  # best effort
        b_tile, mlp_chunks = chosen

    BT, C = b_tile, mlp_chunks
    assert B % BT == 0 and D4 % C == 0
    T = B // BT

    x_tiled = x_bld.reshape(T, BT * L, D)              # group BT sequences per block

    def wspec(shape, imap):
        return pl.BlockSpec((1,) + tuple(shape), imap)

    in_specs = [
        pl.BlockSpec((1, BT * L, D), lambda t, l, c: (t, 0, 0)),     # x (layer 0 only)
        wspec((1, D), lambda t, l, c: (l, 0, 0)),                    # ln_1 gamma
        wspec((1, D), lambda t, l, c: (l, 0, 0)),                    # ln_1 beta
        wspec((D, 3 * D), lambda t, l, c: (l, 0, 0)),                # qkv proj W (bf16)
        wspec((1, 3 * D), lambda t, l, c: (l, 0, 0)),                # qkv proj b
        wspec((D, D), lambda t, l, c: (l, 0, 0)),                    # out proj W (bf16)
        wspec((1, D), lambda t, l, c: (l, 0, 0)),                    # out proj b
        wspec((1, D), lambda t, l, c: (l, 0, 0)),                    # ln_2 gamma
        wspec((1, D), lambda t, l, c: (l, 0, 0)),                    # ln_2 beta
        wspec((D, D4 // C), lambda t, l, c: (l, 0, c)),              # c_fc W (col chunk)
        wspec((1, D4 // C), lambda t, l, c: (l, 0, c)),              # c_fc b
        wspec((D4 // C, D), lambda t, l, c: (l, c, 0)),              # c_proj W (row chunk)
        wspec((1, D), lambda t, l, c: (l, 0, 0)),                    # c_proj b
    ]

    vmem_limit = int(min(max(est(BT, C) + (8 << 20), 32 << 20), vmem_cap - (2 << 20)))

    kernel = functools.partial(_transformer_kernel, d_model=D, n_head=n_head,
                               b_tile=BT, seq_len=L)

    out = pl.pallas_call(
        kernel,
        out_shape=jax.ShapeDtypeStruct((T, BT * L, D), jnp.float32),
        grid=(T, LAYERS, C),
        in_specs=in_specs,
        out_specs=pl.BlockSpec((1, BT * L, D), lambda t, l, c: (t, 0, 0)),
        scratch_shapes=[
            pltpu.VMEM((BT * L, D), jnp.float32),   # residual stream (carried over layers)
            pltpu.VMEM((BT, L, D), jnp.float32),    # per-head attention output slab
            pltpu.VMEM((BT * L, D), jnp.bfloat16),  # LN2 activations (reused per MLP chunk)
            pltpu.VMEM((BT * L, D), jnp.float32),   # MLP / residual accumulator
        ],
        compiler_params=pltpu.CompilerParams(
            dimension_semantics=("parallel", "arbitrary", "arbitrary"),
            vmem_limit_bytes=vmem_limit),
    )(x_tiled, *weight_args)
    return out.reshape(B, L, D)


def init_transformer_params(key, *, width, layers):
    """Deterministic synthetic parameters, stacked over layers (standard CLIP layout).

    Matmul weights are stored bf16 (pre-transposed for x @ W), biases/LN in fp32.
    The 1/sqrt(head_dim) attention scale is NOT folded here; see prepare_transformer_params.
    """
    D = width
    per_layer = []
    for i in range(layers):
        ks = jax.random.split(jax.random.fold_in(key, i), 6)
        p = {
            "ln1_g": jnp.ones((1, D), jnp.float32),
            "ln1_b": jnp.zeros((1, D), jnp.float32),
            "wqkv": (0.02 * jax.random.normal(ks[0], (D, 3 * D), jnp.float32)
                     ).astype(jnp.bfloat16),
            "bqkv": 0.01 * jax.random.normal(ks[1], (1, 3 * D), jnp.float32),
            "wo":   (0.02 * jax.random.normal(ks[2], (D, D), jnp.float32)
                     ).astype(jnp.bfloat16),
            "bo":   jnp.zeros((1, D), jnp.float32),
            "ln2_g": jnp.ones((1, D), jnp.float32),
            "ln2_b": jnp.zeros((1, D), jnp.float32),
            "w1":   (0.02 * jax.random.normal(ks[3], (D, 4 * D), jnp.float32)
                     ).astype(jnp.bfloat16),
            "b1":   0.01 * jax.random.normal(ks[4], (1, 4 * D), jnp.float32),
            "w2":   (0.02 * jax.random.normal(ks[5], (4 * D, D), jnp.float32)
                     ).astype(jnp.bfloat16),
            "b2":   jnp.zeros((1, D), jnp.float32),
        }
        per_layer.append(p)
    return {k: jnp.stack([p[k] for p in per_layer], axis=0) for k in _PARAM_ORDER}


def prepare_transformer_params(params, *, n_head):
    """One-time param prep for the kernel: fold 1/sqrt(head_dim) into the Q columns."""
    D = params["wqkv"].shape[1]
    hd = D // n_head
    scale = 1.0 / math.sqrt(hd)
    wqkv = params["wqkv"]
    w_q = (wqkv[:, :, :D].astype(jnp.float32) * scale).astype(wqkv.dtype)
    bqkv = params["bqkv"]
    b_q = bqkv[:, :, :D] * scale
    out = dict(params)
    out["wqkv"] = jnp.concatenate([w_q, wqkv[:, :, D:]], axis=-1)
    out["bqkv"] = jnp.concatenate([b_q, bqkv[:, :, D:]], axis=-1)
    return out


@functools.partial(jax.jit, static_argnames=("n_head",))
def transformer_forward(x_lbd, params, *, n_head):
    """Transformer.forward: x (L, B, D) seq-first fp32, adapter=None path.

    `params` must be pre-processed with prepare_transformer_params (q-scale folded).
    """
    D = x_lbd.shape[-1]
    x = jnp.transpose(x_lbd, (1, 0, 2))                    # -> (B, L, D)
    y = transformer_pallas(x, params, d_model=D, n_head=n_head)
    return jnp.transpose(y, (1, 0, 2))                     # back to (L, B, D)


def transformer_reference(x_lbd, params, *, n_head):
    """Pure-JAX reference on RAW params (runtime q scaling, like the PyTorch module);
    matmul operands bf16 with f32 accumulation to mirror the kernel precision."""
    D = x_lbd.shape[-1]
    H = n_head
    hd = D // H
    layers = params["wqkv"].shape[0]
    x = jnp.transpose(x_lbd, (1, 0, 2)).astype(jnp.float32)   # (B, L, D)
    B, L, _ = x.shape

    def ln(v, g, b):
        mu = jnp.mean(v, axis=-1, keepdims=True)
        vc = v - mu
        var = jnp.mean(vc * vc, axis=-1, keepdims=True)
        return vc * lax.rsqrt(var + LN_EPS) * g + b

    def mm(a, w):
        return jnp.dot(a.astype(jnp.bfloat16), w.astype(jnp.bfloat16),
                       preferred_element_type=jnp.float32)

    for li in range(layers):
        xn = ln(x, params["ln1_g"][li], params["ln1_b"][li])
        qkv = mm(xn, params["wqkv"][li]) + params["bqkv"][li]
        q = qkv[..., 0 * D:1 * D] * (1.0 / math.sqrt(hd))
        k = qkv[..., 1 * D:2 * D]
        v = qkv[..., 2 * D:3 * D]
        q = q.reshape(B, L, H, hd).transpose(0, 2, 1, 3)
        k = k.reshape(B, L, H, hd).transpose(0, 2, 1, 3)
        v = v.reshape(B, L, H, hd).transpose(0, 2, 1, 3)
        s = jnp.einsum("bhqd,bhkd->bhqk", q.astype(jnp.bfloat16), k.astype(jnp.bfloat16),
                       preferred_element_type=jnp.float32)
        s = s - jnp.max(s, axis=-1, keepdims=True)
        p = jnp.exp(s)
        p = p / jnp.sum(p, axis=-1, keepdims=True)
        o = jnp.einsum("bhqk,bhkd->bhqd", p.astype(jnp.bfloat16), v.astype(jnp.bfloat16),
                       preferred_element_type=jnp.float32)
        attn = o.transpose(0, 2, 1, 3).reshape(B, L, D)
        x = x + mm(attn, params["wo"][li]) + params["bo"][li]
        x2 = ln(x, params["ln2_g"][li], params["ln2_b"][li])
        h1 = mm(x2, params["w1"][li]) + params["b1"][li]
        h1 = h1 * jax.nn.sigmoid(1.702 * h1)
        x = x + mm(h1, params["w2"][li]) + params["b2"][li]
    return jnp.transpose(x, (1, 0, 2))


if __name__ == "__main__":
    # Small shapes: seq L=8, batch B=2, width D=32, heads=4, layers=2.
    L, B, D, H, LAYERS = 8, 2, 32, 4, 2

    key = jax.random.PRNGKey(0)
    kx, kp = jax.random.split(key)
    x = jax.random.normal(kx, (L, B, D), jnp.float32)      # (seq, batch, width)
    params = init_transformer_params(kp, width=D, layers=LAYERS)
    prepped = prepare_transformer_params(params, n_head=H)

    out = transformer_forward(x, prepped, n_head=H)
    out = jax.block_until_ready(out)
    assert out.shape == (L, B, D) and out.dtype == jnp.float32

    ref = transformer_reference(x, params, n_head=H)
    err = float(jnp.max(jnp.abs(out - ref)))
    assert err < 2e-2, f"kernel vs reference max abs err {err}"

    print("KERNEL_OK")
</pallas_src>

<mosaic_0001>
module attributes {stable_mosaic.version = 11 : i64} {
  func.func @_transformer_kernel(%arg0: i32, %arg1: i32, %arg2: i32, %arg3: memref<1x16x32xf32, #tpu.memory_space<vmem>>, %arg4: memref<1x1x32xf32, #tpu.memory_space<vmem>>, %arg5: memref<1x1x32xf32, #tpu.memory_space<vmem>>, %arg6: memref<1x32x96xbf16, #tpu.memory_space<vmem>>, %arg7: memref<1x1x96xf32, #tpu.memory_space<vmem>>, %arg8: memref<1x32x32xbf16, #tpu.memory_space<vmem>>, %arg9: memref<1x1x32xf32, #tpu.memory_space<vmem>>, %arg10: memref<1x1x32xf32, #tpu.memory_space<vmem>>, %arg11: memref<1x1x32xf32, #tpu.memory_space<vmem>>, %arg12: memref<1x32x128xbf16, #tpu.memory_space<vmem>>, %arg13: memref<1x1x128xf32, #tpu.memory_space<vmem>>, %arg14: memref<1x128x32xbf16, #tpu.memory_space<vmem>>, %arg15: memref<1x1x32xf32, #tpu.memory_space<vmem>>, %arg16: memref<1x16x32xf32, #tpu.memory_space<vmem>>, %arg17: memref<16x32xf32, #tpu.memory_space<vmem>>, %arg18: memref<2x8x32xf32, #tpu.memory_space<vmem>>, %arg19: memref<16x32xbf16, #tpu.memory_space<vmem>>, %arg20: memref<16x32xf32, #tpu.memory_space<vmem>>) attributes {dimension_semantics = [#tpu.dimension_semantics<parallel>, #tpu.dimension_semantics<arbitrary>, #tpu.dimension_semantics<arbitrary>], iteration_bounds = array<i64: 1, 2, 1>, scalar_prefetch = 0 : i64, scratch_operands = 4 : i64, tpu.core_type = #tpu.core_type<tc>, window_params = [{transform_indices = @transform_0, window_bounds = array<i64: 1, 16, 32>}, {transform_indices = @transform_1, window_bounds = array<i64: 1, 1, 32>}, {transform_indices = @transform_2, window_bounds = array<i64: 1, 1, 32>}, {transform_indices = @transform_3, window_bounds = array<i64: 1, 32, 96>}, {transform_indices = @transform_4, window_bounds = array<i64: 1, 1, 96>}, {transform_indices = @transform_5, window_bounds = array<i64: 1, 32, 32>}, {transform_indices = @transform_6, window_bounds = array<i64: 1, 1, 32>}, {transform_indices = @transform_7, window_bounds = array<i64: 1, 1, 32>}, {transform_indices = @transform_8, window_bounds = array<i64: 1, 1, 32>}, {transform_indices = @transform_9, window_bounds = array<i64: 1, 32, 128>}, {transform_indices = @transform_10, window_bounds = array<i64: 1, 1, 128>}, {transform_indices = @transform_11, window_bounds = array<i64: 1, 128, 32>}, {transform_indices = @transform_12, window_bounds = array<i64: 1, 1, 32>}, {transform_indices = @transform_13, window_bounds = array<i64: 1, 16, 32>}]} {
    %c0_i32 = arith.constant 0 : i32
    %0 = arith.cmpi eq, %arg2, %c0_i32 : i32
    %c0_i32_0 = arith.constant 0 : i32
    %1 = arith.cmpi eq, %arg2, %c0_i32_0 : i32
    %c0_i32_1 = arith.constant 0 : i32
    %2 = arith.cmpi eq, %arg1, %c0_i32_1 : i32
    %3 = arith.andi %2, %0 : i1
    %4 = arith.extui %3 : i1 to i32
    %c0_i32_2 = arith.constant 0 : i32
    %5 = arith.cmpi ne, %4, %c0_i32_2 : i32
    scf.if %5 {
      %c0_23 = arith.constant 0 : index
      %c0_24 = arith.constant 0 : index
      %c0_25 = arith.constant 0 : index
      %37 = vector.load %arg3[%c0_23, %c0_24, %c0_25] : memref<1x16x32xf32, #tpu.memory_space<vmem>>, vector<1x16x32xf32>
      %38 = vector.shape_cast %37 : vector<1x16x32xf32> to vector<16x32xf32>
      %c0_26 = arith.constant 0 : index
      %c0_27 = arith.constant 0 : index
      %39 = vector.load %arg17[%c0_26, %c0_27] : memref<16x32xf32, #tpu.memory_space<vmem>>, vector<16x32xf32>
      tpu.vector_store %arg17[%c0_26, %c0_27], %38 {strides = array<i32>} : memref<16x32xf32, #tpu.memory_space<vmem>>, vector<16x32xf32>,
    } else {
    }
    %6 = arith.extui %0 : i1 to i32
    %c0_i32_3 = arith.constant 0 : i32
    %7 = arith.cmpi ne, %6, %c0_i32_3 : i32
    scf.if %7 {
      %c0_23 = arith.constant 0 : index
      %c0_24 = arith.constant 0 : index
      %37 = vector.load %arg17[%c0_23, %c0_24] : memref<16x32xf32, #tpu.memory_space<vmem>>, vector<16x32xf32>
      %c0_25 = arith.constant 0 : index
      %c0_26 = arith.constant 0 : index
      %c0_27 = arith.constant 0 : index
      %38 = vector.load %arg4[%c0_25, %c0_26, %c0_27] : memref<1x1x32xf32, #tpu.memory_space<vmem>>, vector<1x1x32xf32>
      %39 = vector.shape_cast %38 : vector<1x1x32xf32> to vector<1x32xf32>
      %c0_28 = arith.constant 0 : index
      %c0_29 = arith.constant 0 : index
      %c0_30 = arith.constant 0 : index
      %40 = vector.load %arg5[%c0_28, %c0_29, %c0_30] : memref<1x1x32xf32, #tpu.memory_space<vmem>>, vector<1x1x32xf32>
      %41 = vector.shape_cast %40 : vector<1x1x32xf32> to vector<1x32xf32>
      %cst_31 = arith.constant dense<0.000000e+00> : vector<16xf32>
      %42 = vector.multi_reduction <add>, %37, %cst_31 [1] : vector<16x32xf32> to vector<16xf32>
      %43 = vector.shape_cast %42 : vector<16xf32> to vector<16x1xf32>
      %cst_32 = arith.constant 3.200000e+01 : f32
      %44 = vector.broadcast %cst_32 : f32 to vector<16x1xf32>
      %45 = arith.divf %43, %44 : vector<16x1xf32>
      %46 = vector.broadcast %45 : vector<16x1xf32> to vector<16x32xf32>
      %47 = arith.subf %37, %46 : vector<16x32xf32>
      %48 = arith.mulf %47, %47 : vector<16x32xf32>
      %cst_33 = arith.constant dense<0.000000e+00> : vector<16xf32>
      %49 = vector.multi_reduction <add>, %48, %cst_33 [1] : vector<16x32xf32> to vector<16xf32>
      %50 = vector.shape_cast %49 : vector<16xf32> to vector<16x1xf32>
      %cst_34 = arith.constant 3.200000e+01 : f32
      %51 = vector.broadcast %cst_34 : f32 to vector<16x1xf32>
      %52 = arith.divf %50, %51 : vector<16x1xf32>
      %cst_35 = arith.constant 9.99999974E-6 : f32
      %53 = vector.broadcast %cst_35 : f32 to vector<16x1xf32>
      %54 = arith.addf %52, %53 : vector<16x1xf32>
      %55 = math.rsqrt %54 : vector<16x1xf32>
      %56 = vector.broadcast %55 : vector<16x1xf32> to vector<16x32xf32>
      %57 = arith.mulf %47, %56 : vector<16x32xf32>
      %58 = vector.broadcast %39 : vector<1x32xf32> to vector<16x32xf32>
      %59 = arith.mulf %57, %58 : vector<16x32xf32>
      %60 = vector.broadcast %41 : vector<1x32xf32> to vector<16x32xf32>
      %61 = arith.addf %59, %60 : vector<16x32xf32>
      %62 = arith.truncf %61 : vector<16x32xf32> to vector<16x32xbf16>
      %c0_36 = arith.constant 0 : index
      %c0_37 = arith.constant 0 : index
      %c0_38 = arith.constant 0 : index
      %63 = vector.load %arg6[%c0_36, %c0_37, %c0_38] : memref<1x32x96xbf16, #tpu.memory_space<vmem>>, vector<1x32x96xbf16>
      %64 = vector.shape_cast %63 : vector<1x32x96xbf16> to vector<32x96xbf16>
      %cst_39 = arith.constant dense<0.000000e+00> : vector<16x96xf32>
      %65 = tpu.matmul %62, %64, %cst_39 {dimension_numbers = #tpu.dot_dimension_numbers<[1], [0], [0], [1], [0, 0, 1, 1], [], []>} : vector<16x32xbf16>, vector<32x96xbf16>, vector<16x96xf32> -> vector<16x96xf32>
      %c0_40 = arith.constant 0 : index
      %c0_41 = arith.constant 0 : index
      %c0_42 = arith.constant 0 : index
      %66 = vector.load %arg7[%c0_40, %c0_41, %c0_42] : memref<1x1x96xf32, #tpu.memory_space<vmem>>, vector<1x1x96xf32>
      %67 = vector.shape_cast %66 : vector<1x1x96xf32> to vector<1x96xf32>
      %68 = vector.broadcast %67 : vector<1x96xf32> to vector<16x96xf32>
      %69 = arith.addf %65, %68 : vector<16x96xf32>
      %70 = vector.shape_cast %69 : vector<16x96xf32> to vector<2x8x96xf32>
      %71 = vector.extract_strided_slice %70 {offsets = [0, 0, 0], sizes = [2, 8, 32], strides = [1, 1, 1]} : vector<2x8x96xf32> to vector<2x8x32xf32>
      %72 = arith.truncf %71 : vector<2x8x32xf32> to vector<2x8x32xbf16>
      %73 = vector.extract_strided_slice %70 {offsets = [0, 0, 32], sizes = [2, 8, 32], strides = [1, 1, 1]} : vector<2x8x96xf32> to vector<2x8x32xf32>
      %74 = arith.truncf %73 : vector<2x8x32xf32> to vector<2x8x32xbf16>
      %75 = vector.extract_strided_slice %70 {offsets = [0, 0, 64], sizes = [2, 8, 32], strides = [1, 1, 1]} : vector<2x8x96xf32> to vector<2x8x32xf32>
      %76 = arith.truncf %75 : vector<2x8x32xf32> to vector<2x8x32xbf16>
      %77 = vector.extract_strided_slice %72 {offsets = [0, 0, 0], sizes = [2, 8, 8], strides = [1, 1, 1]} : vector<2x8x32xbf16> to vector<2x8x8xbf16>
      %78 = vector.extract_strided_slice %74 {offsets = [0, 0, 0], sizes = [2, 8, 8], strides = [1, 1, 1]} : vector<2x8x32xbf16> to vector<2x8x8xbf16>
      "tpu.trace_start"() <{level = 10 : i32, message = "bqd,bkd->bqk"}> : () -> ()
      %cst_43 = arith.constant dense<0.000000e+00> : vector<2x8x8xf32>
      %79 = tpu.matmul %77, %78, %cst_43 {dimension_numbers = #tpu.dot_dimension_numbers<[2], [2], [1], [1], [0, 0, 0, 1, 1, 1], [0], [0]>} : vector<2x8x8xbf16>, vector<2x8x8xbf16>, vector<2x8x8xf32> -> vector<2x8x8xf32>
      "tpu.trace_stop"() : () -> ()
      %cst_44 = arith.constant dense<0xFF800000> : vector<2x8xf32>
      %80 = vector.multi_reduction <maximumf>, %79, %cst_44 [2] : vector<2x8x8xf32> to vector<2x8xf32>
      %81 = vector.shape_cast %80 : vector<2x8xf32> to vector<2x8x1xf32>
      %82 = vector.broadcast %81 : vector<2x8x1xf32> to vector<2x8x8xf32>
      %83 = arith.subf %79, %82 : vector<2x8x8xf32>
      %84 = math.exp %83 : vector<2x8x8xf32>
      %cst_45 = arith.constant dense<0.000000e+00> : vector<2x8xf32>
      %85 = vector.multi_reduction <add>, %84, %cst_45 [2] : vector<2x8x8xf32> to vector<2x8xf32>
      %86 = vector.shape_cast %85 : vector<2x8xf32> to vector<2x8x1xf32>
      %87 = tpu.reciprocal %86 {approx = true} : vector<2x8x1xf32> -> vector<2x8x1xf32>
      %88 = vector.broadcast %87 : vector<2x8x1xf32> to vector<2x8x8xf32>
      %89 = arith.mulf %84, %88 : vector<2x8x8xf32>
      %90 = arith.truncf %89 : vector<2x8x8xf32> to vector<2x8x8xbf16>
      %91 = vector.extract_strided_slice %76 {offsets = [0, 0, 0], sizes = [2, 8, 8], strides = [1, 1, 1]} : vector<2x8x32xbf16> to vector<2x8x8xbf16>
      "tpu.trace_start"() <{level = 10 : i32, message = "bqk,bkd->bqd"}> : () -> ()
      %cst_46 = arith.constant dense<0.000000e+00> : vector<2x8x8xf32>
      %92 = tpu.matmul %90, %91, %cst_46 {dimension_numbers = #tpu.dot_dimension_numbers<[2], [1], [1], [2], [0, 0, 0, 1, 1, 2], [0], [0]>} : vector<2x8x8xbf16>, vector<2x8x8xbf16>, vector<2x8x8xf32> -> vector<2x8x8xf32>
      "tpu.trace_stop"() : () -> ()
      %c0_47 = arith.constant 0 : index
      %c0_48 = arith.constant 0 : index
      %c0_49 = arith.constant 0 : index
      %93 = vector.load %arg18[%c0_47, %c0_48, %c0_49] : memref<2x8x32xf32, #tpu.memory_space<vmem>>, vector<2x8x8xf32>
      tpu.vector_store %arg18[%c0_47, %c0_48, %c0_49], %92 {strides = array<i32>} : memref<2x8x32xf32, #tpu.memory_space<vmem>>, vector<2x8x8xf32>,
      %94 = vector.extract_strided_slice %72 {offsets = [0, 0, 8], sizes = [2, 8, 8], strides = [1, 1, 1]} : vector<2x8x32xbf16> to vector<2x8x8xbf16>
      %95 = vector.extract_strided_slice %74 {offsets = [0, 0, 8], sizes = [2, 8, 8], strides = [1, 1, 1]} : vector<2x8x32xbf16> to vector<2x8x8xbf16>
      "tpu.trace_start"() <{level = 10 : i32, message = "bqd,bkd->bqk"}> : () -> ()
      %cst_50 = arith.constant dense<0.000000e+00> : vector<2x8x8xf32>
      %96 = tpu.matmul %94, %95, %cst_50 {dimension_numbers = #tpu.dot_dimension_numbers<[2], [2], [1], [1], [0, 0, 0, 1, 1, 1], [0], [0]>} : vector<2x8x8xbf16>, vector<2x8x8xbf16>, vector<2x8x8xf32> -> vector<2x8x8xf32>
      "tpu.trace_stop"() : () -> ()
      %cst_51 = arith.constant dense<0xFF800000> : vector<2x8xf32>
      %97 = vector.multi_reduction <maximumf>, %96, %cst_51 [2] : vector<2x8x8xf32> to vector<2x8xf32>
      %98 = vector.shape_cast %97 : vector<2x8xf32> to vector<2x8x1xf32>
      %99 = vector.broadcast %98 : vector<2x8x1xf32> to vector<2x8x8xf32>
      %100 = arith.subf %96, %99 : vector<2x8x8xf32>
      %101 = math.exp %100 : vector<2x8x8xf32>
      %cst_52 = arith.constant dense<0.000000e+00> : vector<2x8xf32>
      %102 = vector.multi_reduction <add>, %101, %cst_52 [2] : vector<2x8x8xf32> to vector<2x8xf32>
      %103 = vector.shape_cast %102 : vector<2x8xf32> to vector<2x8x1xf32>
      %104 = tpu.reciprocal %103 {approx = true} : vector<2x8x1xf32> -> vector<2x8x1xf32>
      %105 = vector.broadcast %104 : vector<2x8x1xf32> to vector<2x8x8xf32>
      %106 = arith.mulf %101, %105 : vector<2x8x8xf32>
      %107 = arith.truncf %106 : vector<2x8x8xf32> to vector<2x8x8xbf16>
      %108 = vector.extract_strided_slice %76 {offsets = [0, 0, 8], sizes = [2, 8, 8], strides = [1, 1, 1]} : vector<2x8x32xbf16> to vector<2x8x8xbf16>
      "tpu.trace_start"() <{level = 10 : i32, message = "bqk,bkd->bqd"}> : () -> ()
      %cst_53 = arith.constant dense<0.000000e+00> : vector<2x8x8xf32>
      %109 = tpu.matmul %107, %108, %cst_53 {dimension_numbers = #tpu.dot_dimension_numbers<[2], [1], [1], [2], [0, 0, 0, 1, 1, 2], [0], [0]>} : vector<2x8x8xbf16>, vector<2x8x8xbf16>, vector<2x8x8xf32> -> vector<2x8x8xf32>
      "tpu.trace_stop"() : () -> ()
      %c0_54 = arith.constant 0 : index
      %c0_55 = arith.constant 0 : index
      %c8 = arith.constant 8 : index
      %110 = vector.load %arg18[%c0_54, %c0_55, %c8] : memref<2x8x32xf32, #tpu.memory_space<vmem>>, vector<2x8x8xf32>
      tpu.vector_store %arg18[%c0_54, %c0_55, %c8], %109 {strides = array<i32>} : memref<2x8x32xf32, #tpu.memory_space<vmem>>, vector<2x8x8xf32>,
      %111 = vector.extract_strided_slice %72 {offsets = [0, 0, 16], sizes = [2, 8, 8], strides = [1, 1, 1]} : vector<2x8x32xbf16> to vector<2x8x8xbf16>
      %112 = vector.extract_strided_slice %74 {offsets = [0, 0, 16], sizes = [2, 8, 8], strides = [1, 1, 1]} : vector<2x8x32xbf16> to vector<2x8x8xbf16>
      "tpu.trace_start"() <{level = 10 : i32, message = "bqd,bkd->bqk"}> : () -> ()
      %cst_56 = arith.constant dense<0.000000e+00> : vector<2x8x8xf32>
      %113 = tpu.matmul %111, %112, %cst_56 {dimension_numbers = #tpu.dot_dimension_numbers<[2], [2], [1], [1], [0, 0, 0, 1, 1, 1], [0], [0]>} : vector<2x8x8xbf16>, vector<2x8x8xbf16>, vector<2x8x8xf32> -> vector<2x8x8xf32>
      "tpu.trace_stop"() : () -> ()
      %cst_57 = arith.constant dense<0xFF800000> : vector<2x8xf32>
      %114 = vector.multi_reduction <maximumf>, %113, %cst_57 [2] : vector<2x8x8xf32> to vector<2x8xf32>
      %115 = vector.shape_cast %114 : vector<2x8xf32> to vector<2x8x1xf32>
      %116 = vector.broadcast %115 : vector<2x8x1xf32> to vector<2x8x8xf32>
      %117 = arith.subf %113, %116 : vector<2x8x8xf32>
      %118 = math.exp %117 : vector<2x8x8xf32>
      %cst_58 = arith.constant dense<0.000000e+00> : vector<2x8xf32>
      %119 = vector.multi_reduction <add>, %118, %cst_58 [2] : vector<2x8x8xf32> to vector<2x8xf32>
      %120 = vector.shape_cast %119 : vector<2x8xf32> to vector<2x8x1xf32>
      %121 = tpu.reciprocal %120 {approx = true} : vector<2x8x1xf32> -> vector<2x8x1xf32>
      %122 = vector.broadcast %121 : vector<2x8x1xf32> to vector<2x8x8xf32>
      %123 = arith.mulf %118, %122 : vector<2x8x8xf32>
      %124 = arith.truncf %123 : vector<2x8x8xf32> to vector<2x8x8xbf16>
      %125 = vector.extract_strided_slice %76 {offsets = [0, 0, 16], sizes = [2, 8, 8], strides = [1, 1, 1]} : vector<2x8x32xbf16> to vector<2x8x8xbf16>
      "tpu.trace_start"() <{level = 10 : i32, message = "bqk,bkd->bqd"}> : () -> ()
      %cst_59 = arith.constant dense<0.000000e+00> : vector<2x8x8xf32>
      %126 = tpu.matmul %124, %125, %cst_59 {dimension_numbers = #tpu.dot_dimension_numbers<[2], [1], [1], [2], [0, 0, 0, 1, 1, 2], [0], [0]>} : vector<2x8x8xbf16>, vector<2x8x8xbf16>, vector<2x8x8xf32> -> vector<2x8x8xf32>
      "tpu.trace_stop"() : () -> ()
      %c0_60 = arith.constant 0 : index
      %c0_61 = arith.constant 0 : index
      %c16 = arith.constant 16 : index
      %127 = vector.load %arg18[%c0_60, %c0_61, %c16] : memref<2x8x32xf32, #tpu.memory_space<vmem>>, vector<2x8x8xf32>
      tpu.vector_store %arg18[%c0_60, %c0_61, %c16], %126 {strides = array<i32>} : memref<2x8x32xf32, #tpu.memory_space<vmem>>, vector<2x8x8xf32>,
      %128 = vector.extract_strided_slice %72 {offsets = [0, 0, 24], sizes = [2, 8, 8], strides = [1, 1, 1]} : vector<2x8x32xbf16> to vector<2x8x8xbf16>
      %129 = vector.extract_strided_slice %74 {offsets = [0, 0, 24], sizes = [2, 8, 8], strides = [1, 1, 1]} : vector<2x8x32xbf16> to vector<2x8x8xbf16>
      "tpu.trace_start"() <{level = 10 : i32, message = "bqd,bkd->bqk"}> : () -> ()
      %cst_62 = arith.constant dense<0.000000e+00> : vector<2x8x8xf32>
      %130 = tpu.matmul %128, %129, %cst_62 {dimension_numbers = #tpu.dot_dimension_numbers<[2], [2], [1], [1], [0, 0, 0, 1, 1, 1], [0], [0]>} : vector<2x8x8xbf16>, vector<2x8x8xbf16>, vector<2x8x8xf32> -> vector<2x8x8xf32>
      "tpu.trace_stop"() : () -> ()
      %cst_63 = arith.constant dense<0xFF800000> : vector<2x8xf32>
      %131 = vector.multi_reduction <maximumf>, %130, %cst_63 [2] : vector<2x8x8xf32> to vector<2x8xf32>
      %132 = vector.shape_cast %131 : vector<2x8xf32> to vector<2x8x1xf32>
      %133 = vector.broadcast %132 : vector<2x8x1xf32> to vector<2x8x8xf32>
      %134 = arith.subf %130, %133 : vector<2x8x8xf32>
      %135 = math.exp %134 : vector<2x8x8xf32>
      %cst_64 = arith.constant dense<0.000000e+00> : vector<2x8xf32>
      %136 = vector.multi_reduction <add>, %135, %cst_64 [2] : vector<2x8x8xf32> to vector<2x8xf32>
      %137 = vector.shape_cast %136 : vector<2x8xf32> to vector<2x8x1xf32>
      %138 = tpu.reciprocal %137 {approx = true} : vector<2x8x1xf32> -> vector<2x8x1xf32>
      %139 = vector.broadcast %138 : vector<2x8x1xf32> to vector<2x8x8xf32>
      %140 = arith.mulf %135, %139 : vector<2x8x8xf32>
      %141 = arith.truncf %140 : vector<2x8x8xf32> to vector<2x8x8xbf16>
      %142 = vector.extract_strided_slice %76 {offsets = [0, 0, 24], sizes = [2, 8, 8], strides = [1, 1, 1]} : vector<2x8x32xbf16> to vector<2x8x8xbf16>
      "tpu.trace_start"() <{level = 10 : i32, message = "bqk,bkd->bqd"}> : () -> ()
      %cst_65 = arith.constant dense<0.000000e+00> : vector<2x8x8xf32>
      %143 = tpu.matmul %141, %142, %cst_65 {dimension_numbers = #tpu.dot_dimension_numbers<[2], [1], [1], [2], [0, 0, 0, 1, 1, 2], [0], [0]>} : vector<2x8x8xbf16>, vector<2x8x8xbf16>, vector<2x8x8xf32> -> vector<2x8x8xf32>
      "tpu.trace_stop"() : () -> ()
      %c0_66 = arith.constant 0 : index
      %c0_67 = arith.constant 0 : index
      %c24 = arith.constant 24 : index
      %144 = vector.load %arg18[%c0_66, %c0_67, %c24] : memref<2x8x32xf32, #tpu.memory_space<vmem>>, vector<2x8x8xf32>
      tpu.vector_store %arg18[%c0_66, %c0_67, %c24], %143 {strides = array<i32>} : memref<2x8x32xf32, #tpu.memory_space<vmem>>, vector<2x8x8xf32>,
      %c0_68 = arith.constant 0 : index
      %c0_69 = arith.constant 0 : index
      %c0_70 = arith.constant 0 : index
      %145 = vector.load %arg18[%c0_68, %c0_69, %c0_70] : memref<2x8x32xf32, #tpu.memory_space<vmem>>, vector<2x8x32xf32>
      %146 = vector.shape_cast %145 : vector<2x8x32xf32> to vector<16x32xf32>
      %147 = arith.truncf %146 : vector<16x32xf32> to vector<16x32xbf16>
      %c0_71 = arith.constant 0 : index
      %c0_72 = arith.constant 0 : index
      %c0_73 = arith.constant 0 : index
      %148 = vector.load %arg8[%c0_71, %c0_72, %c0_73] : memref<1x32x32xbf16, #tpu.memory_space<vmem>>, vector<1x32x32xbf16>
      %149 = vector.shape_cast %148 : vector<1x32x32xbf16> to vector<32x32xbf16>
      %cst_74 = arith.constant dense<0.000000e+00> : vector<16x32xf32>
      %150 = tpu.matmul %147, %149, %cst_74 {dimension_numbers = #tpu.dot_dimension_numbers<[1], [0], [0], [1], [0, 0, 1, 1], [], []>} : vector<16x32xbf16>, vector<32x32xbf16>, vector<16x32xf32> -> vector<16x32xf32>
      %c0_75 = arith.constant 0 : index
      %c0_76 = arith.constant 0 : index
      %c0_77 = arith.constant 0 : index
      %151 = vector.load %arg9[%c0_75, %c0_76, %c0_77] : memref<1x1x32xf32, #tpu.memory_space<vmem>>, vector<1x1x32xf32>
      %152 = vector.shape_cast %151 : vector<1x1x32xf32> to vector<1x32xf32>
      %153 = vector.broadcast %152 : vector<1x32xf32> to vector<16x32xf32>
      %154 = arith.addf %150, %153 : vector<16x32xf32>
      %155 = arith.addf %37, %154 : vector<16x32xf32>
      %c0_78 = arith.constant 0 : index
      %c0_79 = arith.constant 0 : index
      %c0_80 = arith.constant 0 : index
      %156 = vector.load %arg10[%c0_78, %c0_79, %c0_80] : memref<1x1x32xf32, #tpu.memory_space<vmem>>, vector<1x1x32xf32>
      %157 = vector.shape_cast %156 : vector<1x1x32xf32> to vector<1x32xf32>
      %c0_81 = arith.constant 0 : index
      %c0_82 = arith.constant 0 : index
      %c0_83 = arith.constant 0 : index
      %158 = vector.load %arg11[%c0_81, %c0_82, %c0_83] : memref<1x1x32xf32, #tpu.memory_space<vmem>>, vector<1x1x32xf32>
      %159 = vector.shape_cast %158 : vector<1x1x32xf32> to vector<1x32xf32>
      %cst_84 = arith.constant dense<0.000000e+00> : vector<16xf32>
      %160 = vector.multi_reduction <add>, %155, %cst_84 [1] : vector<16x32xf32> to vector<16xf32>
      %161 = vector.shape_cast %160 : vector<16xf32> to vector<16x1xf32>
      %cst_85 = arith.constant 3.200000e+01 : f32
      %162 = vector.broadcast %cst_85 : f32 to vector<16x1xf32>
      %163 = arith.divf %161, %162 : vector<16x1xf32>
      %164 = vector.broadcast %163 : vector<16x1xf32> to vector<16x32xf32>
      %165 = arith.subf %155, %164 : vector<16x32xf32>
      %166 = arith.mulf %165, %165 : vector<16x32xf32>
      %cst_86 = arith.constant dense<0.000000e+00> : vector<16xf32>
      %167 = vector.multi_reduction <add>, %166, %cst_86 [1] : vector<16x32xf32> to vector<16xf32>
      %168 = vector.shape_cast %167 : vector<16xf32> to vector<16x1xf32>
      %cst_87 = arith.constant 3.200000e+01 : f32
      %169 = vector.broadcast %cst_87 : f32 to vector<16x1xf32>
      %170 = arith.divf %168, %169 : vector<16x1xf32>
      %cst_88 = arith.constant 9.99999974E-6 : f32
      %171 = vector.broadcast %cst_88 : f32 to vector<16x1xf32>
      %172 = arith.addf %170, %171 : vector<16x1xf32>
      %173 = math.rsqrt %172 : vector<16x1xf32>
      %174 = vector.broadcast %173 : vector<16x1xf32> to vector<16x32xf32>
      %175 = arith.mulf %165, %174 : vector<16x32xf32>
      %176 = vector.broadcast %157 : vector<1x32xf32> to vector<16x32xf32>
      %177 = arith.mulf %175, %176 : vector<16x32xf32>
      %178 = vector.broadcast %159 : vector<1x32xf32> to vector<16x32xf32>
      %179 = arith.addf %177, %178 : vector<16x32xf32>
      %180 = arith.truncf %179 : vector<16x32xf32> to vector<16x32xbf16>
      %c0_89 = arith.constant 0 : index
      %c0_90 = arith.constant 0 : index
      %181 = vector.load %arg19[%c0_89, %c0_90] : memref<16x32xbf16, #tpu.memory_space<vmem>>, vector<16x32xbf16>
      tpu.vector_store %arg19[%c0_89, %c0_90], %180 {strides = array<i32>} : memref<16x32xbf16, #tpu.memory_space<vmem>>, vector<16x32xbf16>,
      %c0_91 = arith.constant 0 : index
      %c0_92 = arith.constant 0 : index
      %c0_93 = arith.constant 0 : index
      %182 = vector.load %arg15[%c0_91, %c0_92, %c0_93] : memref<1x1x32xf32, #tpu.memory_space<vmem>>, vector<1x1x32xf32>
      %183 = vector.shape_cast %182 : vector<1x1x32xf32> to vector<1x32xf32>
      %184 = vector.broadcast %183 : vector<1x32xf32> to vector<16x32xf32>
      %185 = arith.addf %155, %184 : vector<16x32xf32>
      %c0_94 = arith.constant 0 : index
      %c0_95 = arith.constant 0 : index
      %186 = vector.load %arg20[%c0_94, %c0_95] : memref<16x32xf32, #tpu.memory_space<vmem>>, vector<16x32xf32>
      tpu.vector_store %arg20[%c0_94, %c0_95], %185 {strides = array<i32>} : memref<16x32xf32, #tpu.memory_space<vmem>>, vector<16x32xf32>,
    } else {
    }
    %c0 = arith.constant 0 : index
    %c0_4 = arith.constant 0 : index
    %8 = vector.load %arg19[%c0, %c0_4] : memref<16x32xbf16, #tpu.memory_space<vmem>>, vector<16x32xbf16>
    %c0_5 = arith.constant 0 : index
    %c0_6 = arith.constant 0 : index
    %c0_7 = arith.constant 0 : index
    %9 = vector.load %arg12[%c0_5, %c0_6, %c0_7] : memref<1x32x128xbf16, #tpu.memory_space<vmem>>, vector<1x32x128xbf16>
    %10 = vector.shape_cast %9 : vector<1x32x128xbf16> to vector<32x128xbf16>
    %cst = arith.constant dense<0.000000e+00> : vector<16x128xf32>
    %11 = tpu.matmul %8, %10, %cst {dimension_numbers = #tpu.dot_dimension_numbers<[1], [0], [0], [1], [0, 0, 1, 1], [], []>} : vector<16x32xbf16>, vector<32x128xbf16>, vector<16x128xf32> -> vector<16x128xf32>
    %c0_8 = arith.constant 0 : index
    %c0_9 = arith.constant 0 : index
    %c0_10 = arith.constant 0 : index
    %12 = vector.load %arg13[%c0_8, %c0_9, %c0_10] : memref<1x1x128xf32, #tpu.memory_space<vmem>>, vector<1x1x128xf32>
    %13 = vector.shape_cast %12 : vector<1x1x128xf32> to vector<1x128xf32>
    %14 = vector.broadcast %13 : vector<1x128xf32> to vector<16x128xf32>
    %15 = arith.addf %11, %14 : vector<16x128xf32>
    %cst_11 = arith.constant 1.702000e+00 : f32
    %16 = vector.broadcast %cst_11 : f32 to vector<16x128xf32>
    %17 = arith.mulf %16, %15 : vector<16x128xf32>
    %18 = arith.negf %17 : vector<16x128xf32>
    %19 = math.exp %18 : vector<16x128xf32>
    %cst_12 = arith.constant 1.000000e+00 : f32
    %20 = vector.broadcast %cst_12 : f32 to vector<16x128xf32>
    %21 = arith.addf %20, %19 : vector<16x128xf32>
    %22 = arith.divf %20, %21 : vector<16x128xf32>
    %23 = arith.mulf %15, %22 : vector<16x128xf32>
    %c0_13 = arith.constant 0 : index
    %c0_14 = arith.constant 0 : index
    %24 = vector.load %arg20[%c0_13, %c0_14] : memref<16x32xf32, #tpu.memory_space<vmem>>, vector<16x32xf32>
    %25 = arith.truncf %23 : vector<16x128xf32> to vector<16x128xbf16>
    %c0_15 = arith.constant 0 : index
    %c0_16 = arith.constant 0 : index
    %c0_17 = arith.constant 0 : index
    %26 = vector.load %arg14[%c0_15, %c0_16, %c0_17] : memref<1x128x32xbf16, #tpu.memory_space<vmem>>, vector<1x128x32xbf16>
    %27 = vector.shape_cast %26 : vector<1x128x32xbf16> to vector<128x32xbf16>
    %cst_18 = arith.constant dense<0.000000e+00> : vector<16x32xf32>
    %28 = tpu.matmul %25, %27, %cst_18 {dimension_numbers = #tpu.dot_dimension_numbers<[1], [0], [0], [1], [0, 0, 1, 1], [], []>} : vector<16x128xbf16>, vector<128x32xbf16>, vector<16x32xf32> -> vector<16x32xf32>
    %29 = arith.addf %24, %28 : vector<16x32xf32>
    %c0_19 = arith.constant 0 : index
    %c0_20 = arith.constant 0 : index
    %30 = vector.load %arg20[%c0_19, %c0_20] : memref<16x32xf32, #tpu.memory_space<vmem>>, vector<16x32xf32>
    tpu.vector_store %arg20[%c0_19, %c0_20], %29 {strides = array<i32>} : memref<16x32xf32, #tpu.memory_space<vmem>>, vector<16x32xf32>,
    %31 = arith.extui %1 : i1 to i32
    %c0_i32_21 = arith.constant 0 : i32
    %32 = arith.cmpi ne, %31, %c0_i32_21 : i32
    scf.if %32 {
      %c0_23 = arith.constant 0 : index
      %c0_24 = arith.constant 0 : index
      %37 = vector.load %arg20[%c0_23, %c0_24] : memref<16x32xf32, #tpu.memory_space<vmem>>, vector<16x32xf32>
      %c0_25 = arith.constant 0 : index
      %c0_26 = arith.constant 0 : index
      %38 = vector.load %arg17[%c0_25, %c0_26] : memref<16x32xf32, #tpu.memory_space<vmem>>, vector<16x32xf32>
      tpu.vector_store %arg17[%c0_25, %c0_26], %37 {strides = array<i32>} : memref<16x32xf32, #tpu.memory_space<vmem>>, vector<16x32xf32>,
    } else {
    }
    %c1_i32 = arith.constant 1 : i32
    %33 = arith.cmpi eq, %arg1, %c1_i32 : i32
    %34 = arith.andi %1, %33 : i1
    %35 = arith.extui %34 : i1 to i32
    %c0_i32_22 = arith.constant 0 : i32
    %36 = arith.cmpi ne, %35, %c0_i32_22 : i32
    scf.if %36 {
      %c0_23 = arith.constant 0 : index
      %c0_24 = arith.constant 0 : index
      %37 = vector.load %arg20[%c0_23, %c0_24] : memref<16x32xf32, #tpu.memory_space<vmem>>, vector<16x32xf32>
      %c0_25 = arith.constant 0 : index
      %c0_26 = arith.constant 0 : index
      %c0_27 = arith.constant 0 : index
      %38 = vector.load %arg16[%c0_25, %c0_26, %c0_27] : memref<1x16x32xf32, #tpu.memory_space<vmem>>, vector<1x16x32xf32>
      %39 = vector.shape_cast %38 : vector<1x16x32xf32> to vector<16x32xf32>
      %40 = vector.shape_cast %37 : vector<16x32xf32> to vector<1x16x32xf32>
      tpu.vector_store %arg16[%c0_25, %c0_26, %c0_27], %40 {strides = array<i32>} : memref<1x16x32xf32, #tpu.memory_space<vmem>>, vector<1x16x32xf32>,
    } else {
    }
    return
  }
  func.func @transform_0(%arg0: i32, %arg1: i32, %arg2: i32) -> (i32, i32, i32) {
    %c0_i32 = arith.constant 0 : i32
    %c0_i32_0 = arith.constant 0 : i32
    %c0_i32_1 = arith.constant 0 : i32
    return %arg0, %c0_i32, %c0_i32_0 : i32, i32, i32
  }
  func.func @transform_1(%arg0: i32, %arg1: i32, %arg2: i32) -> (i32, i32, i32) {
    %c0_i32 = arith.constant 0 : i32
    %c0_i32_0 = arith.constant 0 : i32
    %c0_i32_1 = arith.constant 0 : i32
    return %arg1, %c0_i32, %c0_i32_0 : i32, i32, i32
  }
  func.func @transform_2(%arg0: i32, %arg1: i32, %arg2: i32) -> (i32, i32, i32) {
    %c0_i32 = arith.constant 0 : i32
    %c0_i32_0 = arith.constant 0 : i32
    %c0_i32_1 = arith.constant 0 : i32
    return %arg1, %c0_i32, %c0_i32_0 : i32, i32, i32
  }
  func.func @transform_3(%arg0: i32, %arg1: i32, %arg2: i32) -> (i32, i32, i32) {
    %c0_i32 = arith.constant 0 : i32
    %c0_i32_0 = arith.constant 0 : i32
    %c0_i32_1 = arith.constant 0 : i32
    return %arg1, %c0_i32, %c0_i32_0 : i32, i32, i32
  }
  func.func @transform_4(%arg0: i32, %arg1: i32, %arg2: i32) -> (i32, i32, i32) {
    %c0_i32 = arith.constant 0 : i32
    %c0_i32_0 = arith.constant 0 : i32
    %c0_i32_1 = arith.constant 0 : i32
    return %arg1, %c0_i32, %c0_i32_0 : i32, i32, i32
  }
  func.func @transform_5(%arg0: i32, %arg1: i32, %arg2: i32) -> (i32, i32, i32) {
    %c0_i32 = arith.constant 0 : i32
    %c0_i32_0 = arith.constant 0 : i32
    %c0_i32_1 = arith.constant 0 : i32
    return %arg1, %c0_i32, %c0_i32_0 : i32, i32, i32
  }
  func.func @transform_6(%arg0: i32, %arg1: i32, %arg2: i32) -> (i32, i32, i32) {
    %c0_i32 = arith.constant 0 : i32
    %c0_i32_0 = arith.constant 0 : i32
    %c0_i32_1 = arith.constant 0 : i32
    return %arg1, %c0_i32, %c0_i32_0 : i32, i32, i32
  }
  func.func @transform_7(%arg0: i32, %arg1: i32, %arg2: i32) -> (i32, i32, i32) {
    %c0_i32 = arith.constant 0 : i32
    %c0_i32_0 = arith.constant 0 : i32
    %c0_i32_1 = arith.constant 0 : i32
    return %arg1, %c0_i32, %c0_i32_0 : i32, i32, i32
  }
  func.func @transform_8(%arg0: i32, %arg1: i32, %arg2: i32) -> (i32, i32, i32) {
    %c0_i32 = arith.constant 0 : i32
    %c0_i32_0 = arith.constant 0 : i32
    %c0_i32_1 = arith.constant 0 : i32
    return %arg1, %c0_i32, %c0_i32_0 : i32, i32, i32
  }
  func.func @transform_9(%arg0: i32, %arg1: i32, %arg2: i32) -> (i32, i32, i32) {
    %c0_i32 = arith.constant 0 : i32
    %c0_i32_0 = arith.constant 0 : i32
    return %arg1, %c0_i32, %arg2 : i32, i32, i32
  }
  func.func @transform_10(%arg0: i32, %arg1: i32, %arg2: i32) -> (i32, i32, i32) {
    %c0_i32 = arith.constant 0 : i32
    %c0_i32_0 = arith.constant 0 : i32
    return %arg1, %c0_i32, %arg2 : i32, i32, i32
  }
  func.func @transform_11(%arg0: i32, %arg1: i32, %arg2: i32) -> (i32, i32, i32) {
    %c0_i32 = arith.constant 0 : i32
    %c0_i32_0 = arith.constant 0 : i32
    return %arg1, %arg2, %c0_i32 : i32, i32, i32
  }
  func.func @transform_12(%arg0: i32, %arg1: i32, %arg2: i32) -> (i32, i32, i32) {
    %c0_i32 = arith.constant 0 : i32
    %c0_i32_0 = arith.constant 0 : i32
    %c0_i32_1 = arith.constant 0 : i32
    return %arg1, %c0_i32, %c0_i32_0 : i32, i32, i32
  }
  func.func @transform_13(%arg0: i32, %arg1: i32, %arg2: i32) -> (i32, i32, i32) {
    %c0_i32 = arith.constant 0 : i32
    %c0_i32_0 = arith.constant 0 : i32
    %c0_i32_1 = arith.constant 0 : i32
    return %arg0, %c0_i32, %c0_i32_0 : i32, i32, i32
  }
}

</mosaic_0001>

<llo_original>
// kernel: transformer_forward.1
$region0: #{transformer_forward.1}
  #allocation0 [shape = 'u32[]', space=smem, size = 0x4, offset = 0x4, fixed_abs, tag = 'smem constant byte address 0x4 - core index']
  #allocation1 [shape = 'u32[144,128]{1,0:T(1,128)}', space=vmem, size = 0x12000, scoped, tag = 'internal scratch']
  #allocation2 [shape = 'f32[16,32]{1,0:T(8,128)}', space=vmem, size = 0x2000, scoped, tag = 'scratch operand']
  #allocation3 [shape = 'f32[2,8,32]{2,1,0:T(8,128)}', space=vmem, size = 0x2000, scoped, tag = 'scratch operand']
  #allocation4 [shape = 'bf16[16,32]{1,0:T(16,128)(2,1)}', space=vmem, size = 0x1000, scoped, tag = 'scratch operand']
  #allocation5 [shape = 'f32[16,32]{1,0:T(8,128)}', space=vmem, size = 0x2000, scoped, tag = 'scratch operand']
  %s0 = inlined_call_operand.vmem [shape: f32[1,16,32], index: 0, kind: input, shape index: {}]
  %s1 = inlined_call_operand.vmem [shape: f32[2,1,32], index: 1, kind: input, shape index: {}]
  %s2 = inlined_call_operand.vmem [shape: f32[2,1,32], index: 2, kind: input, shape index: {}]
  %s3 = inlined_call_operand.vmem [shape: bf16[2,32,96], index: 3, kind: input, shape index: {}]
  %s4 = inlined_call_operand.vmem [shape: f32[2,1,96], index: 4, kind: input, shape index: {}]
  %s5 = inlined_call_operand.vmem [shape: bf16[2,32,32], index: 5, kind: input, shape index: {}]
  %s6 = inlined_call_operand.vmem [shape: f32[2,1,32], index: 6, kind: input, shape index: {}]
  %s7 = inlined_call_operand.vmem [shape: f32[2,1,32], index: 7, kind: input, shape index: {}]
  %s8 = inlined_call_operand.vmem [shape: f32[2,1,32], index: 8, kind: input, shape index: {}]
  %s9 = inlined_call_operand.vmem [shape: bf16[2,32,128], index: 9, kind: input, shape index: {}]
  %s10 = inlined_call_operand.vmem [shape: f32[2,1,128], index: 10, kind: input, shape index: {}]
  %s11 = inlined_call_operand.vmem [shape: bf16[2,128,32], index: 11, kind: input, shape index: {}]
  %s12 = inlined_call_operand.vmem [shape: f32[2,1,32], index: 12, kind: input, shape index: {}]
  %s13 = inlined_call_operand.vmem [shape: f32[1,16,32], index: 13, kind: output, shape index: {}]
  %s14 = sld [smem:[#allocation0]]
  $region101: #{transformer_forward.1} parent=0
    _
  %s16 = ssub.s32 1, %s14
  %s17 = scalar_select 0, %s16, %s14
  loop: start=0, step=1, limit=4
  $region2: #{transformer_forward.1} parent=0 // loop_pre_header
    _
  $region3: #{transformer_forward.1} parent=0 // loop_header
    %s19 = sphi 0, %s23
    %p20 = scmp.ge.s32.totalorder %s19, 4
    %s26 = sphi 0, %s45
    %s27 = sphi 0, %s41
    %s28 = sphi 0, %s37
    %s29 = sphi 0, %s26
    %s30 = sphi 0, %s27
    %s31 = sphi 0, %s28
    %s32 = sphi 0, %s29
    %s33 = sphi 0, %s30
    %s34 = sphi 0, %s31
    %s48 = sphi 0, %s50
    %s51 = sphi 0, %s48
    %s52 = sphi 0, %s51
    %s68 = sphi 0, %s52
    %s74 = sphi 0, %s76
    %s77 = sphi 0, %s74
    %s78 = sphi 0, %s77
    %s94 = sphi 0, %s78
    %s100 = sphi 0, %s102
    %s103 = sphi 0, %s100
    %s104 = sphi 0, %s103
    %s120 = sphi 0, %s104
    %s126 = sphi 0, %s128
    %s129 = sphi 0, %s126
    %s130 = sphi 0, %s129
    %s146 = sphi 0, %s130
    %s152 = sphi 0, %s154
    %s155 = sphi 0, %s152
    %s156 = sphi 0, %s155
    %s172 = sphi 0, %s156
    %s178 = sphi 0, %s180
    %s181 = sphi 0, %s178
    %s182 = sphi 0, %s181
    %s198 = sphi 0, %s182
    %s204 = sphi 0, %s206
    %s207 = sphi 0, %s204
    %s208 = sphi 0, %s207
    %s224 = sphi 0, %s208
    %s230 = sphi 0, %s232
    %s233 = sphi 0, %s230
    %s234 = sphi 0, %s233
    %s250 = sphi 0, %s234
    %s256 = sphi 0, %s258
    %s259 = sphi 0, %s256
    %s260 = sphi 0, %s259
    %s276 = sphi 0, %s260
    %s284 = sphi 0, %s286
    %s287 = sphi 0, %s284
    %s288 = sphi 0, %s287
    %s304 = sphi 0, %s288
    %s312 = sphi 0, %s314
    %s315 = sphi 0, %s312
    %s316 = sphi 0, %s315
    %s332 = sphi 0, %s316
    %s340 = sphi 0, %s342
    %s343 = sphi 0, %s340
    %s344 = sphi 0, %s343
    %s360 = sphi 0, %s344
    %s366 = sphi 0, %s368
    %s369 = sphi 0, %s366
    %s370 = sphi 0, %s369
    %s386 = sphi 0, %s370
    %s392 = sphi 0, %s394
    %s395 = sphi 0, %s392
    %s396 = sphi 0, %s395
    %s412 = sphi 0, %s396
  $region4: #{transformer_forward.1} parent=0 // loop_header_branch
    %22 = sbr.rel (%p20) target = $region8
  $region5: #{transformer_forward.1} parent=0 // loop_body
    %s24 = ssub.s32 %s19, 1
    %s25 = ssub.s32 %s19, 2
    %s35 = sadd.s32 1, %s28
    %p36 = scmp.ge.s32.totalorder %s35, 1
    %s37 = scalar_select %p36, 0, %s35
    %s38 = sadd.s32 1, %s27
    %s39 = scalar_select %p36, %s38, %s27
    %p40 = scmp.ge.s32.totalorder %s39, 2
    %s41 = scalar_select %p40, 0, %s39
    %s42 = sadd.s32 1, %s26
    %s43 = scalar_select %p40, %s42, %s26
    %p44 = scmp.ge.s32.totalorder %s43, 1
    %s45 = scalar_select %p44, 0, %s43
    %s46 = ssub.s32 %s26, %s45
    %p47 = scmp.eq.s32.totalorder %s46, 0
    %s49 = sadd.s32 %s48, 1
    %s50 = scalar_select %p47, %s48, %s49
    %p53 = pneg %p47
    %p54 = scmp.eq.s32.totalorder %s19, 1
    %p55 = por %p53, %p54
    %p56 = scmp.ne.s32.totalorder %s48, %s51
    %p57 = scmp.eq.s32.totalorder %s19, 0
    %p58 = por %p56, %p57
    %p59 = scmp.ne.s32.totalorder %s48, %s51
    %p60 = scmp.eq.s32.totalorder %s24, 1
    %p61 = por %p59, %p60
    %p62 = scmp.ne.s32.totalorder %s51, %s52
    %p63 = scmp.eq.s32.totalorder %s24, 0
    %p64 = por %p62, %p63
    %p65 = scmp.ne.s32.totalorder %s51, %s52
    %p66 = scmp.eq.s32.totalorder %s25, 1
    %p67 = por %p65, %p66
    %p69 = scmp.ne.s32.totalorder %s52, %s68
    %p70 = scmp.eq.s32.totalorder %s25, 0
    %p71 = por %p69, %p70
    %s72 = ssub.s32 %s27, %s41
    %p73 = scmp.eq.s32.totalorder %s72, 0
    %s75 = sadd.s32 %s74, 1
    %s76 = scalar_select %p73, %s74, %s75
    %p79 = pneg %p73
    %p80 = scmp.eq.s32.totalorder %s19, 1
    %p81 = por %p79, %p80
    %p82 = scmp.ne.s32.totalorder %s74, %s77
    %p83 = scmp.eq.s32.totalorder %s19, 0
    %p84 = por %p82, %p83
    %p85 = scmp.ne.s32.totalorder %s74, %s77
    %p86 = scmp.eq.s32.totalorder %s24, 1
    %p87 = por %p85, %p86
    %p88 = scmp.ne.s32.totalorder %s77, %s78
    %p89 = scmp.eq.s32.totalorder %s24, 0
    %p90 = por %p88, %p89
    %p91 = scmp.ne.s32.totalorder %s77, %s78
    %p92 = scmp.eq.s32.totalorder %s25, 1
    %p93 = por %p91, %p92
    %p95 = scmp.ne.s32.totalorder %s78, %s94
    %p96 = scmp.eq.s32.totalorder %s25, 0
    %p97 = por %p95, %p96
    %s98 = ssub.s32 %s27, %s41
    %p99 = scmp.eq.s32.totalorder %s98, 0
    %s101 = sadd.s32 %s100, 1
    %s102 = scalar_select %p99, %s100, %s101
    %p105 = pneg %p99
    %p106 = scmp.eq.s32.totalorder %s19, 1
    %p107 = por %p105, %p106
    %p108 = scmp.ne.s32.totalorder %s100, %s103
    %p109 = scmp.eq.s32.totalorder %s19, 0
    %p110 = por %p108, %p109
    %p111 = scmp.ne.s32.totalorder %s100, %s103
    %p112 = scmp.eq.s32.totalorder %s24, 1
    %p113 = por %p111, %p112
    %p114 = scmp.ne.s32.totalorder %s103, %s104
    %p115 = scmp.eq.s32.totalorder %s24, 0
    %p116 = por %p114, %p115
    %p117 = scmp.ne.s32.totalorder %s103, %s104
    %p118 = scmp.eq.s32.totalorder %s25, 1
    %p119 = por %p117, %p118
    %p121 = scmp.ne.s32.totalorder %s104, %s120
    %p122 = scmp.eq.s32.totalorder %s25, 0
    %p123 = por %p121, %p122
    %s124 = ssub.s32 %s27, %s41
    %p125 = scmp.eq.s32.totalorder %s124, 0
    %s127 = sadd.s32 %s126, 1
    %s128 = scalar_select %p125, %s126, %s127
    %p131 = pneg %p125
    %p132 = scmp.eq.s32.totalorder %s19, 1
    %p133 = por %p131, %p132
    %p134 = scmp.ne.s32.totalorder %s126, %s129
    %p135 = scmp.eq.s32.totalorder %s19, 0
    %p136 = por %p134, %p135
    %p137 = scmp.ne.s32.totalorder %s126, %s129
    %p138 = scmp.eq.s32.totalorder %s24, 1
    %p139 = por %p137, %p138
    %p140 = scmp.ne.s32.totalorder %s129, %s130
    %p141 = scmp.eq.s32.totalorder %s24, 0
    %p142 = por %p140, %p141
    %p143 = scmp.ne.s32.totalorder %s129, %s130
    %p144 = scmp.eq.s32.totalorder %s25, 1
    %p145 = por %p143, %p144
    %p147 = scmp.ne.s32.totalorder %s130, %s146
    %p148 = scmp.eq.s32.totalorder %s25, 0
    %p149 = por %p147, %p148
    %s150 = ssub.s32 %s27, %s41
    %p151 = scmp.eq.s32.totalorder %s150, 0
    %s153 = sadd.s32 %s152, 1
    %s154 = scalar_select %p151, %s152, %s153
    %p157 = pneg %p151
    %p158 = scmp.eq.s32.totalorder %s19, 1
    %p159 = por %p157, %p158
    %p160 = scmp.ne.s32.totalorder %s152, %s155
    %p161 = scmp.eq.s32.totalorder %s19, 0
    %p162 = por %p160, %p161
    %p163 = scmp.ne.s32.totalorder %s152, %s155
    %p164 = scmp.eq.s32.totalorder %s24, 1
    %p165 = por %p163, %p164
    %p166 = scmp.ne.s32.totalorder %s155, %s156
    %p167 = scmp.eq.s32.totalorder %s24, 0
    %p168 = por %p166, %p167
    %p169 = scmp.ne.s32.totalorder %s155, %s156
    %p170 = scmp.eq.s32.totalorder %s25, 1
    %p171 = por %p169, %p170
    %p173 = scmp.ne.s32.totalorder %s156, %s172
    %p174 = scmp.eq.s32.totalorder %s25, 0
    %p175 = por %p173, %p174
    %s176 = ssub.s32 %s27, %s41
    %p177 = scmp.eq.s32.totalorder %s176, 0
    %s179 = sadd.s32 %s178, 1
    %s180 = scalar_select %p177, %s178, %s179
    %p183 = pneg %p177
    %p184 = scmp.eq.s32.totalorder %s19, 1
    %p185 = por %p183, %p184
    %p186 = scmp.ne.s32.totalorder %s178, %s181
    %p187 = scmp.eq.s32.totalorder %s19, 0
    %p188 = por %p186, %p187
    %p189 = scmp.ne.s32.totalorder %s178, %s181
    %p190 = scmp.eq.s32.totalorder %s24, 1
    %p191 = por %p189, %p190
    %p192 = scmp.ne.s32.totalorder %s181, %s182
    %p193 = scmp.eq.s32.totalorder %s24, 0
    %p194 = por %p192, %p193
    %p195 = scmp.ne.s32.totalorder %s181, %s182
    %p196 = scmp.eq.s32.totalorder %s25, 1
    %p197 = por %p195, %p196
    %p199 = scmp.ne.s32.totalorder %s182, %s198
    %p200 = scmp.eq.s32.totalorder %s25, 0
    %p201 = por %p199, %p200
    %s202 = ssub.s32 %s27, %s41
    %p203 = scmp.eq.s32.totalorder %s202, 0
    %s205 = sadd.s32 %s204, 1
    %s206 = scalar_select %p203, %s204, %s205
    %p209 = pneg %p203
    %p210 = scmp.eq.s32.totalorder %s19, 1
    %p211 = por %p209, %p210
    %p212 = scmp.ne.s32.totalorder %s204, %s207
    %p213 = scmp.eq.s32.totalorder %s19, 0
    %p214 = por %p212, %p213
    %p215 = scmp.ne.s32.totalorder %s204, %s207
    %p216 = scmp.eq.s32.totalorder %s24, 1
    %p217 = por %p215, %p216
    %p218 = scmp.ne.s32.totalorder %s207, %s208
    %p219 = scmp.eq.s32.totalorder %s24, 0
    %p220 = por %p218, %p219
    %p221 = scmp.ne.s32.totalorder %s207, %s208
    %p222 = scmp.eq.s32.totalorder %s25, 1
    %p223 = por %p221, %p222
    %p225 = scmp.ne.s32.totalorder %s208, %s224
    %p226 = scmp.eq.s32.totalorder %s25, 0
    %p227 = por %p225, %p226
    %s228 = ssub.s32 %s27, %s41
    %p229 = scmp.eq.s32.totalorder %s228, 0
    %s231 = sadd.s32 %s230, 1
    %s232 = scalar_select %p229, %s230, %s231
    %p235 = pneg %p229
    %p236 = scmp.eq.s32.totalorder %s19, 1
    %p237 = por %p235, %p236
    %p238 = scmp.ne.s32.totalorder %s230, %s233
    %p239 = scmp.eq.s32.totalorder %s19, 0
    %p240 = por %p238, %p239
    %p241 = scmp.ne.s32.totalorder %s230, %s233
    %p242 = scmp.eq.s32.totalorder %s24, 1
    %p243 = por %p241, %p242
    %p244 = scmp.ne.s32.totalorder %s233, %s234
    %p245 = scmp.eq.s32.totalorder %s24, 0
    %p246 = por %p244, %p245
    %p247 = scmp.ne.s32.totalorder %s233, %s234
    %p248 = scmp.eq.s32.totalorder %s25, 1
    %p249 = por %p247, %p248
    %p251 = scmp.ne.s32.totalorder %s234, %s250
    %p252 = scmp.eq.s32.totalorder %s25, 0
    %p253 = por %p251, %p252
    %s254 = ssub.s32 %s27, %s41
    %p255 = scmp.eq.s32.totalorder %s254, 0
    %s257 = sadd.s32 %s256, 1
    %s258 = scalar_select %p255, %s256, %s257
    %p261 = pneg %p255
    %p262 = scmp.eq.s32.totalorder %s19, 1
    %p263 = por %p261, %p262
    %p264 = scmp.ne.s32.totalorder %s256, %s259
    %p265 = scmp.eq.s32.totalorder %s19, 0
    %p266 = por %p264, %p265
    %p267 = scmp.ne.s32.totalorder %s256, %s259
    %p268 = scmp.eq.s32.totalorder %s24, 1
    %p269 = por %p267, %p268
    %p270 = scmp.ne.s32.totalorder %s259, %s260
    %p271 = scmp.eq.s32.totalorder %s24, 0
    %p272 = por %p270, %p271
    %p273 = scmp.ne.s32.totalorder %s259, %s260
    %p274 = scmp.eq.s32.totalorder %s25, 1
    %p275 = por %p273, %p274
    %p277 = scmp.ne.s32.totalorder %s260, %s276
    %p278 = scmp.eq.s32.totalorder %s25, 0
    %p279 = por %p277, %p278
    %s280 = ssub.s32 %s27, %s41
    %s281 = ssub.s32 %s28, %s37
    %s282 = sor.u32 %s280, %s281
    %p283 = scmp.eq.s32.totalorder %s282, 0
    %s285 = sadd.s32 %s284, 1
    %s286 = scalar_select %p283, %s284, %s285
    %p289 = pneg %p283
    %p290 = scmp.eq.s32.totalorder %s19, 1
    %p291 = por %p289, %p290
    %p292 = scmp.ne.s32.totalorder %s284, %s287
    %p293 = scmp.eq.s32.totalorder %s19, 0
    %p294 = por %p292, %p293
    %p295 = scmp.ne.s32.totalorder %s284, %s287
    %p296 = scmp.eq.s32.totalorder %s24, 1
    %p297 = por %p295, %p296
    %p298 = scmp.ne.s32.totalorder %s287, %s288
    %p299 = scmp.eq.s32.totalorder %s24, 0
    %p300 = por %p298, %p299
    %p301 = scmp.ne.s32.totalorder %s287, %s288
    %p302 = scmp.eq.s32.totalorder %s25, 1
    %p303 = por %p301, %p302
    %p305 = scmp.ne.s32.totalorder %s288, %s304
    %p306 = scmp.eq.s32.totalorder %s25, 0
    %p307 = por %p305, %p306
    %s308 = ssub.s32 %s27, %s41
    %s309 = ssub.s32 %s28, %s37
    %s310 = sor.u32 %s308, %s309
    %p311 = scmp.eq.s32.totalorder %s310, 0
    %s313 = sadd.s32 %s312, 1
    %s314 = scalar_select %p311, %s312, %s313
    %p317 = pneg %p311
    %p318 = scmp.eq.s32.totalorder %s19, 1
    %p319 = por %p317, %p318
    %p320 = scmp.ne.s32.totalorder %s312, %s315
    %p321 = scmp.eq.s32.totalorder %s19, 0
    %p322 = por %p320, %p321
    %p323 = scmp.ne.s32.totalorder %s312, %s315
    %p324 = scmp.eq.s32.totalorder %s24, 1
    %p325 = por %p323, %p324
    %p326 = scmp.ne.s32.totalorder %s315, %s316
    %p327 = scmp.eq.s32.totalorder %s24, 0
    %p328 = por %p326, %p327
    %p329 = scmp.ne.s32.totalorder %s315, %s316
    %p330 = scmp.eq.s32.totalorder %s25, 1
    %p331 = por %p329, %p330
    %p333 = scmp.ne.s32.totalorder %s316, %s332
    %p334 = scmp.eq.s32.totalorder %s25, 0
    %p335 = por %p333, %p334
    %s336 = ssub.s32 %s27, %s41
    %s337 = ssub.s32 %s28, %s37
    %s338 = sor.u32 %s336, %s337
    %p339 = scmp.eq.s32.totalorder %s338, 0
    %s341 = sadd.s32 %s340, 1
    %s342 = scalar_select %p339, %s340, %s341
    %p345 = pneg %p339
    %p346 = scmp.eq.s32.totalorder %s19, 1
    %p347 = por %p345, %p346
    %p348 = scmp.ne.s32.totalorder %s340, %s343
    %p349 = scmp.eq.s32.totalorder %s19, 0
    %p350 = por %p348, %p349
    %p351 = scmp.ne.s32.totalorder %s340, %s343
    %p352 = scmp.eq.s32.totalorder %s24, 1
    %p353 = por %p351, %p352
    %p354 = scmp.ne.s32.totalorder %s343, %s344
    %p355 = scmp.eq.s32.totalorder %s24, 0
    %p356 = por %p354, %p355
    %p357 = scmp.ne.s32.totalorder %s343, %s344
    %p358 = scmp.eq.s32.totalorder %s25, 1
    %p359 = por %p357, %p358
    %p361 = scmp.ne.s32.totalorder %s344, %s360
    %p362 = scmp.eq.s32.totalorder %s25, 0
    %p363 = por %p361, %p362
    %s364 = ssub.s32 %s27, %s41
    %p365 = scmp.eq.s32.totalorder %s364, 0
    %s367 = sadd.s32 %s366, 1
    %s368 = scalar_select %p365, %s366, %s367
    %p371 = pneg %p365
    %p372 = scmp.eq.s32.totalorder %s19, 1
    %p373 = por %p371, %p372
    %p374 = scmp.ne.s32.totalorder %s366, %s369
    %p375 = scmp.eq.s32.totalorder %s19, 0
    %p376 = por %p374, %p375
    %p377 = scmp.ne.s32.totalorder %s366, %s369
    %p378 = scmp.eq.s32.totalorder %s24, 1
    %p379 = por %p377, %p378
    %p380 = scmp.ne.s32.totalorder %s369, %s370
    %p381 = scmp.eq.s32.totalorder %s24, 0
    %p382 = por %p380, %p381
    %p383 = scmp.ne.s32.totalorder %s369, %s370
    %p384 = scmp.eq.s32.totalorder %s25, 1
    %p385 = por %p383, %p384
    %p387 = scmp.ne.s32.totalorder %s370, %s386
    %p388 = scmp.eq.s32.totalorder %s25, 0
    %p389 = por %p387, %p388
    %s390 = ssub.s32 %s26, %s45
    %p391 = scmp.eq.s32.totalorder %s390, 0
    %s393 = sadd.s32 %s392, 1
    %s394 = scalar_select %p391, %s392, %s393
    %p397 = pneg %p391
    %p398 = scmp.eq.s32.totalorder %s19, 1
    %p399 = por %p397, %p398
    %p400 = scmp.ne.s32.totalorder %s392, %s395
    %p401 = scmp.eq.s32.totalorder %s19, 0
    %p402 = por %p400, %p401
    %p403 = scmp.ne.s32.totalorder %s392, %s395
    %p404 = scmp.eq.s32.totalorder %s24, 1
    %p405 = por %p403, %p404
    %p406 = scmp.ne.s32.totalorder %s395, %s396
    %p407 = scmp.eq.s32.totalorder %s24, 0
    %p408 = por %p406, %p407
    %p409 = scmp.ne.s32.totalorder %s395, %s396
    %p410 = scmp.eq.s32.totalorder %s25, 1
    %p411 = por %p409, %p410
    %p413 = scmp.ne.s32.totalorder %s396, %s412
    %p414 = scmp.eq.s32.totalorder %s25, 0
    %p415 = por %p413, %p414
    %p416 = scmp.le.s32.totalorder 1, %s19
    %p417 = scmp.lt.s32.totalorder %s19, 3
    %p418 = pnand %p416, %p417
    %p419 = pneg %p418
    // Predicated region
    $region9: #{transformer_forward.1} parent=5 // pred_check
      _
    $region10: #{transformer_forward.1} parent=5 // pred_check_branch
      %421 = sbr.rel (%p418) target = $region12
    $region11: #{transformer_forward.1} parent=5 // pred_region
      %s422 = ssub.s32 %s19, 1
      // Predicated region
      $region13: #{transformer_forward.1} parent=11 // pred_check
        %p423 = pneg %p64
      $region14: #{transformer_forward.1} parent=11 // pred_check_branch
        %425 = sbr.rel (%p423) target = $region16
      $region15: #{transformer_forward.1} parent=11 // pred_region
        %p426 = scmp.lt.s32.totalorder %s29, 0
        %s427 = scalar_select %p426, %s29, 0
        %s428 = smul.addr %s427, 2
        %s429 = smul.addr %s428, 8
        %s430 = scalar_lea.vmem %s0, %s429
      $region16: #{transformer_forward.1} parent=11 // pred_fallthru
        _
    $region12: #{transformer_forward.1} parent=5 // pred_fallthru
      _
    %p431 = scmp.lt.s32.totalorder %s19, 2
    // Predicated region
    $region17: #{transformer_forward.1} parent=5 // pred_check
      %p432 = pneg %p431
    $region18: #{transformer_forward.1} parent=5 // pred_check_branch
      %434 = sbr.rel (%p432) target = $region20
    $region19: #{transformer_forward.1} parent=5 // pred_region
      // Predicated region
      $region21: #{transformer_forward.1} parent=19 // pred_check
        %p435 = pneg %p84
      $region22: #{transformer_forward.1} parent=19 // pred_check_branch
        %437 = sbr.rel (%p435) target = $region24
      $region23: #{transformer_forward.1} parent=19 // pred_region
        %p438 = scmp.lt.s32.totalorder %s27, 1
        %s439 = scalar_select %p438, %s27, 1
        %s440 = scalar_lea.vmem %s1, %s439
      $region24: #{transformer_forward.1} parent=19 // pred_fallthru
        _
      // Predicated region
      $region25: #{transformer_forward.1} parent=19 // pred_check
        %p441 = pneg %p110
      $region26: #{transformer_forward.1} parent=19 // pred_check_branch
        %443 = sbr.rel (%p441) target = $region28
      $region27: #{transformer_forward.1} parent=19 // pred_region
        %p444 = scmp.lt.s32.totalorder %s27, 1
        %s445 = scalar_select %p444, %s27, 1
        %s446 = scalar_lea.vmem %s2, %s445
      $region28: #{transformer_forward.1} parent=19 // pred_fallthru
        _
      // Predicated region
      $region29: #{transformer_forward.1} parent=19 // pred_check
        %p447 = pneg %p136
      $region30: #{transformer_forward.1} parent=19 // pred_check_branch
        %449 = sbr.rel (%p447) target = $region32
      $region31: #{transformer_forward.1} parent=19 // pred_region
        %p450 = scmp.lt.s32.totalorder %s27, 1
        %s451 = scalar_select %p450, %s27, 1
        %s452 = smul.addr %s451, 4
        %s453 = smul.addr %s452, 4
        %s454 = scalar_lea.vmem %s3, %s453
      $region32: #{transformer_forward.1} parent=19 // pred_fallthru
        _
      // Predicated region
      $region33: #{transformer_forward.1} parent=19 // pred_check
        %p455 = pneg %p162
      $region34: #{transformer_forward.1} parent=19 // pred_check_branch
        %457 = sbr.rel (%p455) target = $region36
      $region35: #{transformer_forward.1} parent=19 // pred_region
        %p458 = scmp.lt.s32.totalorder %s27, 1
        %s459 = scalar_select %p458, %s27, 1
        %s460 = scalar_lea.vmem %s4, %s459
      $region36: #{transformer_forward.1} parent=19 // pred_fallthru
        _
      // Predicated region
      $region37: #{transformer_forward.1} parent=19 // pred_check
        %p461 = pneg %p188
      $region38: #{transformer_forward.1} parent=19 // pred_check_branch
        %463 = sbr.rel (%p461) target = $region40
      $region39: #{transformer_forward.1} parent=19 // pred_region
        %p464 = scmp.lt.s32.totalorder %s27, 1
        %s465 = scalar_select %p464, %s27, 1
        %s466 = smul.addr %s465, 4
        %s467 = smul.addr %s466, 4
        %s468 = scalar_lea.vmem %s5, %s467
      $region40: #{transformer_forward.1} parent=19 // pred_fallthru
        _
      // Predicated region
      $region41: #{transformer_forward.1} parent=19 // pred_check
        %p469 = pneg %p214
      $region42: #{transformer_forward.1} parent=19 // pred_check_branch
        %471 = sbr.rel (%p469) target = $region44
      $region43: #{transformer_forward.1} parent=19 // pred_region
        %p472 = scmp.lt.s32.totalorder %s27, 1
        %s473 = scalar_select %p472, %s27, 1
        %s474 = scalar_lea.vmem %s6, %s473
      $region44: #{transformer_forward.1} parent=19 // pred_fallthru
        _
      // Predicated region
      $region45: #{transformer_forward.1} parent=19 // pred_check
        %p475 = pneg %p240
      $region46: #{transformer_forward.1} parent=19 // pred_check_branch
        %477 = sbr.rel (%p475) target = $region48
      $region47: #{transformer_forward.1} parent=19 // pred_region
        %p478 = scmp.lt.s32.totalorder %s27, 1
        %s479 = scalar_select %p478, %s27, 1
        %s480 = scalar_lea.vmem %s7, %s479
      $region48: #{transformer_forward.1} parent=19 // pred_fallthru
        _
      // Predicated region
      $region49: #{transformer_forward.1} parent=19 // pred_check
        %p481 = pneg %p266
      $region50: #{transformer_forward.1} parent=19 // pred_check_branch
        %483 = sbr.rel (%p481) target = $region52
      $region51: #{transformer_forward.1} parent=19 // pred_region
        %p484 = scmp.lt.s32.totalorder %s27, 1
        %s485 = scalar_select %p484, %s27, 1
        %s486 = scalar_lea.vmem %s8, %s485
      $region52: #{transformer_forward.1} parent=19 // pred_fallthru
        _
      // Predicated region
      $region53: #{transformer_forward.1} parent=19 // pred_check
        %p487 = pneg %p294
      $region54: #{transformer_forward.1} parent=19 // pred_check_branch
        %489 = sbr.rel (%p487) target = $region56
      $region55: #{transformer_forward.1} parent=19 // pred_region
        %p490 = scmp.lt.s32.totalorder %s27, 1
        %s491 = scalar_select %p490, %s27, 1
        %p492 = scmp.lt.s32.totalorder %s28, 0
        %s493 = scalar_select %p492, %s28, 0
        %s494 = smul.addr %s491, 4
        %s495 = sadd.s32 %s493, %s494
        %s496 = smul.addr %s495, 4
        %s497 = scalar_lea.vmem %s9, %s496
      $region56: #{transformer_forward.1} parent=19 // pred_fallthru
        _
      // Predicated region
      $region57: #{transformer_forward.1} parent=19 // pred_check
        %p498 = pneg %p322
      $region58: #{transformer_forward.1} parent=19 // pred_check_branch
        %500 = sbr.rel (%p498) target = $region60
      $region59: #{transformer_forward.1} parent=19 // pred_region
        %p501 = scmp.lt.s32.totalorder %s27, 1
        %s502 = scalar_select %p501, %s27, 1
        %p503 = scmp.lt.s32.totalorder %s28, 0
        %s504 = scalar_select %p503, %s28, 0
        %s505 = sadd.s32 %s504, %s502
        %s506 = scalar_lea.vmem %s10, %s505
      $region60: #{transformer_forward.1} parent=19 // pred_fallthru
        _
      // Predicated region
      $region61: #{transformer_forward.1} parent=19 // pred_check
        %p507 = pneg %p350
      $region62: #{transformer_forward.1} parent=19 // pred_check_branch
        %509 = sbr.rel (%p507) target = $region64
      $region63: #{transformer_forward.1} parent=19 // pred_region
        %s510 = smul.u32 16, %s28
        %p511 = scmp.lt.s32.totalorder %s27, 1
        %s512 = scalar_select %p511, %s27, 1
        %p513 = scmp.lt.s32.totalorder %s510, 15
        %s514 = scalar_select %p513, %s510, 15
        %s515 = smul.addr %s512, 16
        %s516 = sadd.s32 %s514, %s515
        %s517 = smul.addr %s516, 4
        %s518 = scalar_lea.vmem %s11, %s517
        %s519 = smul.u32 16, %s28
      $region64: #{transformer_forward.1} parent=19 // pred_fallthru
        _
      // Predicated region
      $region65: #{transformer_forward.1} parent=19 // pred_check
        %p520 = pneg %p376
      $region66: #{transformer_forward.1} parent=19 // pred_check_branch
        %522 = sbr.rel (%p520) target = $region68
      $region67: #{transformer_forward.1} parent=19 // pred_region
        %p523 = scmp.lt.s32.totalorder %s27, 1
        %s524 = scalar_select %p523, %s27, 1
        %s525 = scalar_lea.vmem %s12, %s524
      $region68: #{transformer_forward.1} parent=19 // pred_fallthru
        _
    $region20: #{transformer_forward.1} parent=5 // pred_fallthru
      _
    %p526 = scmp.le.s32.totalorder 1, %s19
    %p527 = scmp.lt.s32.totalorder %s19, 3
    %p528 = pnand %p526, %p527
    %p529 = pneg %p528
    // Predicated region
    $region69: #{transformer_forward.1} parent=5 // pred_check
      _
    $region70: #{transformer_forward.1} parent=5 // pred_check_branch
      %531 = sbr.rel (%p528) target = $region72
    $region71: #{transformer_forward.1} parent=5 // pred_region
      %s532 = ssub.s32 %s19, 1
      %p533 = scmp.lt.s32.totalorder %s29, 0
      %s534 = scalar_select %p533, %s29, 0
      %s535 = smul.addr %s534, 2
      %s536 = smul.addr %s535, 8
      %s537 = scalar_lea.vmem %s0, %s536
      %p538 = pneg %p64
      %p539 = pneg %p61
      %p540 = scmp.lt.s32.totalorder %s30, 1
      %s541 = scalar_select %p540, %s30, 1
      %s542 = scalar_lea.vmem %s1, %s541
      %p543 = pneg %p90
      %p544 = pneg %p87
      %p545 = scmp.lt.s32.totalorder %s30, 1
      %s546 = scalar_select %p545, %s30, 1
      %s547 = scalar_lea.vmem %s2, %s546
      %p548 = pneg %p116
      %p549 = pneg %p113
      %p550 = scmp.lt.s32.totalorder %s30, 1
      %s551 = scalar_select %p550, %s30, 1
      %s552 = smul.addr %s551, 4
      %s553 = smul.addr %s552, 4
      %s554 = scalar_lea.vmem %s3, %s553
      %p555 = pneg %p142
      %p556 = pneg %p139
      %p557 = scmp.lt.s32.totalorder %s30, 1
      %s558 = scalar_select %p557, %s30, 1
      %s559 = scalar_lea.vmem %s4, %s558
      %p560 = pneg %p168
      %p561 = pneg %p165
      %p562 = scmp.lt.s32.totalorder %s30, 1
      %s563 = scalar_select %p562, %s30, 1
      %s564 = smul.addr %s563, 4
      %s565 = smul.addr %s564, 4
      %s566 = scalar_lea.vmem %s5, %s565
      %p567 = pneg %p194
      %p568 = pneg %p191
      %p569 = scmp.lt.s32.totalorder %s30, 1
      %s570 = scalar_select %p569, %s30, 1
      %s571 = scalar_lea.vmem %s6, %s570
      %p572 = pneg %p220
      %p573 = pneg %p217
      %p574 = scmp.lt.s32.totalorder %s30, 1
      %s575 = scalar_select %p574, %s30, 1
      %s576 = scalar_lea.vmem %s7, %s575
      %p577 = pneg %p246
      %p578 = pneg %p243
      %p579 = scmp.lt.s32.totalorder %s30, 1
      %s580 = scalar_select %p579, %s30, 1
      %s581 = scalar_lea.vmem %s8, %s580
      %p582 = pneg %p272
      %p583 = pneg %p269
      %p584 = scmp.lt.s32.totalorder %s30, 1
      %s585 = scalar_select %p584, %s30, 1
      %p586 = scmp.lt.s32.totalorder %s31, 0
      %s587 = scalar_select %p586, %s31, 0
      %s588 = smul.addr %s585, 4
      %s589 = sadd.s32 %s587, %s588
      %s590 = smul.addr %s589, 4
      %s591 = scalar_lea.vmem %s9, %s590
      %p592 = pneg %p300
      %p593 = pneg %p297
      %p594 = scmp.lt.s32.totalorder %s30, 1
      %s595 = scalar_select %p594, %s30, 1
      %p596 = scmp.lt.s32.totalorder %s31, 0
      %s597 = scalar_select %p596, %s31, 0
      %s598 = sadd.s32 %s597, %s595
      %s599 = scalar_lea.vmem %s10, %s598
      %p600 = pneg %p328
      %p601 = pneg %p325
      %s602 = smul.u32 16, %s31
      %p603 = scmp.lt.s32.totalorder %s30, 1
      %s604 = scalar_select %p603, %s30, 1
      %p605 = scmp.lt.s32.totalorder %s602, 15
      %s606 = scalar_select %p605, %s602, 15
      %s607 = smul.addr %s604, 16
      %s608 = sadd.s32 %s606, %s607
      %s609 = smul.addr %s608, 4
      %s610 = scalar_lea.vmem %s11, %s609
      %p611 = pneg %p356
      %p612 = pneg %p353
      %p613 = scmp.lt.s32.totalorder %s30, 1
      %s614 = scalar_select %p613, %s30, 1
      %s615 = scalar_lea.vmem %s12, %s614
      %p616 = pneg %p382
      %p617 = pneg %p379
      %p618 = pneg %p408
      %p619 = pneg %p405
      %p620 = scmp.lt.s32.totalorder %s29, 0
      %s621 = scalar_select %p620, %s29, 0
      %s622 = smul.addr %s621, 2
      %s623 = smul.addr %s622, 8
      %s624 = scalar_lea.vmem %s13, %s623
      %p625 = scmp.lt.s32.totalorder %s29, 0
      %s626 = scalar_select %p625, %s29, 0
      %s627 = smul.addr %s626, 2
      %s628 = smul.addr %s627, 8
      %s629 = scalar_lea.vmem %s0, %s628
      %p630 = scmp.lt.s32.totalorder %s30, 1
      %s631 = scalar_select %p630, %s30, 1
      %s632 = scalar_lea.vmem %s1, %s631
      %p633 = scmp.lt.s32.totalorder %s30, 1
      %s634 = scalar_select %p633, %s30, 1
      %s635 = scalar_lea.vmem %s2, %s634
      %p636 = scmp.lt.s32.totalorder %s30, 1
      %s637 = scalar_select %p636, %s30, 1
      %s638 = smul.addr %s637, 4
      %s639 = smul.addr %s638, 4
      %s640 = scalar_lea.vmem %s3, %s639
      %p641 = scmp.lt.s32.totalorder %s30, 1
      %s642 = scalar_select %p641, %s30, 1
      %s643 = scalar_lea.vmem %s4, %s642
      %p644 = scmp.lt.s32.totalorder %s30, 1
      %s645 = scalar_select %p644, %s30, 1
      %s646 = smul.addr %s645, 4
      %s647 = smul.addr %s646, 4
      %s648 = scalar_lea.vmem %s5, %s647
      %p649 = scmp.lt.s32.totalorder %s30, 1
      %s650 = scalar_select %p649, %s30, 1
      %s651 = scalar_lea.vmem %s6, %s650
      %p652 = scmp.lt.s32.totalorder %s30, 1
      %s653 = scalar_select %p652, %s30, 1
      %s654 = scalar_lea.vmem %s7, %s653
      %p655 = scmp.lt.s32.totalorder %s30, 1
      %s656 = scalar_select %p655, %s30, 1
      %s657 = scalar_lea.vmem %s8, %s656
      %p658 = scmp.lt.s32.totalorder %s30, 1
      %s659 = scalar_select %p658, %s30, 1
      %p660 = scmp.lt.s32.totalorder %s31, 0
      %s661 = scalar_select %p660, %s31, 0
      %s662 = smul.addr %s659, 4
      %s663 = sadd.s32 %s661, %s662
      %s664 = smul.addr %s663, 4
      %s665 = scalar_lea.vmem %s9, %s664
      %p666 = scmp.lt.s32.totalorder %s30, 1
      %s667 = scalar_select %p666, %s30, 1
      %p668 = scmp.lt.s32.totalorder %s31, 0
      %s669 = scalar_select %p668, %s31, 0
      %s670 = sadd.s32 %s669, %s667
      %s671 = scalar_lea.vmem %s10, %s670
      %s672 = smul.u32 16, %s31
      %p673 = scmp.lt.s32.totalorder %s30, 1
      %s674 = scalar_select %p673, %s30, 1
      %p675 = scmp.lt.s32.totalorder %s672, 15
      %s676 = scalar_select %p675, %s672, 15
      %s677 = smul.addr %s674, 16
      %s678 = sadd.s32 %s676, %s677
      %s679 = smul.addr %s678, 4
      %s680 = scalar_lea.vmem %s11, %s679
      %s681 = smul.u32 16, %s31
      %p682 = scmp.lt.s32.totalorder %s30, 1
      %s683 = scalar_select %p682, %s30, 1
      %s684 = scalar_lea.vmem %s12, %s683
      %p685 = scmp.lt.s32.totalorder %s29, 0
      %s686 = scalar_select %p685, %s29, 0
      %s687 = smul.addr %s686, 2
      %s688 = smul.addr %s687, 8
      %s689 = scalar_lea.vmem %s13, %s688
      %p691 = scmp.eq.s32.totalorder %s31, 0
      %p692 = scmp.eq.s32.totalorder %s30, 0
      %p693 = pnand %p692, %p691
      %p694 = pneg %p693
      // Predicated region
      $region73: #{transformer_forward.1} parent=71 // pred_check
        _
      $region74: #{transformer_forward.1} parent=71 // pred_check_branch
        %696 = sbr.rel (%p693) target = $region76
      $region75: #{transformer_forward.1} parent=71 // pred_region
        %v697 = vld [vmem:[%s629] sm:$0xff]
        %v698 = vld [vmem:[%s629 + $0x8] sm:$0xff]
        %vm699 = vcmask 261120
        %700 = vst.msk [vmem:[#allocation2] sm:$0xff] %vm699, %v697
        %701 = vst.msk [vmem:[#allocation2 + $0x8] sm:$0xff] %vm699, %v698
      $region76: #{transformer_forward.1} parent=71 // pred_fallthru
        _
      // Predicated region
      $region77: #{transformer_forward.1} parent=71 // pred_check
        %p702 = pneg %p691
      $region78: #{transformer_forward.1} parent=71 // pred_check_branch
        %704 = sbr.rel (%p702) target = $region80
      $region79: #{transformer_forward.1} parent=71 // pred_region
        %v705 = vld [vmem:[#allocation2] sm:$0xff]
        %v706 = vld [vmem:[#allocation2 + $0x8] sm:$0xff]
        %v707 = vld [vmem:[%s632] sm:$0x1]
        %v708 = vld [vmem:[%s635] sm:$0x1]
        %vm709 = vcmask 261120
        %v710 = vsel %vm709, %v705, 0.0
        %711 = vadd.xlane.f32.xlu0 %v710
        %v712 = vpop.xlane.xlu0 %711
        %v713 = vsel %vm709, %v706, 0.0
        %714 = vadd.xlane.f32.xlu0 %v713
        %v715 = vpop.xlane.xlu0 %714
        %v716 = vrcp.pop 32.0
        %v717 = vmul.f32 %v712, %v716
        %v718 = vmul.f32 %v715, %v716
        %v719 = vsub.f32 %v705, %v717
        %v720 = vsub.f32 %v706, %v718
        %v721 = vmul.f32 %v719, %v719
        %v722 = vmul.f32 %v720, %v720
        %v723 = vsel %vm709, %v721, 0.0
        %724 = vadd.xlane.f32.xlu0 %v723
        %v725 = vpop.xlane.xlu0 %724
        %v726 = vsel %vm709, %v722, 0.0
        %727 = vadd.xlane.f32.xlu0 %v726
        %v728 = vpop.xlane.xlu0 %727
        %v729 = vmul.f32 %v725, %v716
        %v730 = vmul.f32 %v728, %v716
        %v731 = vadd.f32 %v729, 1e-05
        %v732 = vadd.f32 %v730, 1e-05
        %v733 = vrsqrt.pop %v731
        %v734 = vrsqrt.pop %v732
        %v735 = vmul.f32 %v719, %v733
        %v736 = vmul.f32 %v720, %v734
        %v738 = vlaneseq
        %v739 = vshrl.u32 %v738, 7
        %v740 = vsub.s32 0, %v739
        %v741 = vrot.slane %v707, %v740
        %v743 = vmul.f32 %v735, %v741
        %v744 = vmul.f32 %v736, %v741
        %v746 = vlaneseq
        %v747 = vshrl.u32 %v746, 7
        %v748 = vsub.s32 0, %v747
        %v749 = vrot.slane %v708, %v748
        %v751 = vadd.f32 %v743, %v749
        %v752 = vadd.f32 %v744, %v749
        %v753 = vpack.c.bf16 %v752, %v751
        %v754 = vld [vmem:[%s640] sm:$0xf]
        %v755 = vld [vmem:[%s640 + $0x4] sm:$0xf]
        %v756 = vld [vmem:[%s640 + $0x8] sm:$0xf]
        %v757 = vld [vmem:[%s640 + $0xc] sm:$0xf]
        %v758 = vld [vmem:[%s643] sm:$0x1]
        %v760 = vlaneseq
        %v761 = vshrl.u32 %v760, 7
        %v762 = vsub.s32 0, %v761
        %v763 = vrot.slane %v758, %v762
        %v769 = vunpack.c.l.b16 %v754
        %v770 = vunpack.c.l.b16 %v755
        %v771 = vunpack.c.l.b16 %v756
        %v772 = vunpack.c.l.b16 %v757
        %v773 = vpack.c.b16 %v770, %v769
        %v774 = vpack.c.b16 %v772, %v771
        %v778 = vsel %vm709, %v753, 0
        %780 = vmatprep.subr.bf16.mxu0 0
        %781 = vmatpush1.bf16.msra.mxu0 %v773
        %782 = vmatprep.subr.bf16.mxu0 0
        %783 = vmatpush1.bf16.msra.mxu0 %v774
        %784 = vmatprep.subr.bf16.mxu0 0
        %785 = vmatpush1.bf16.msra.mxu0 0
        %786 = vmatprep.subr.bf16.mxu0 0
        %787 = vmatpush1.bf16.msra.mxu0 0
        %788 = vmatprep.subr.bf16.mxu0 0
        %789 = vmatpush1.bf16.msra.mxu0 0
        %790 = vmatprep.subr.bf16.mxu0 0
        %791 = vmatpush1.bf16.msra.mxu0 0
        %792 = vmatprep.subr.bf16.mxu0 0
        %793 = vmatpush1.bf16.msra.mxu0 0
        %794 = vmatprep.subr.bf16.mxu0 0
        %795 = vmatpush1.bf16.msra.mxu0 0
        %796 = vmatprep.subr.bf16.mxu0 0
        %797 = vmatpush1.bf16.msra.mxu0 0
        %798 = vmatprep.subr.bf16.mxu0 0
        %799 = vmatpush1.bf16.msra.mxu0 0
        %800 = vmatprep.subr.bf16.mxu0 0
        %801 = vmatpush1.bf16.msra.mxu0 0
        %802 = vmatprep.subr.bf16.mxu0 0
        %803 = vmatpush1.bf16.msra.mxu0 0
        %804 = vmatprep.subr.bf16.mxu0 0
        %805 = vmatpush1.bf16.msra.mxu0 0
        %806 = vmatprep.subr.bf16.mxu0 0
        %807 = vmatpush1.bf16.msra.mxu0 0
        %808 = vmatprep.subr.bf16.mxu0 0
        %809 = vmatpush1.bf16.msra.mxu0 0
        %810 = vmatprep.subr.bf16.mxu0 0
        %811 = vmatpush1.bf16.msra.mxu0 0
        %812 = vmatprep.mubr.bf16.mxu0 0
        %813 = vmatmul.mubr.bf16.gmra.mrb[0].mxu0 %v778
        %v814 = vpop.f32.mrb[0].mxu0
        %v815 = vadd.f32 %v763, %v814
        %v816 = vpop.f32.mrb[0].mxu0
        %v817 = vpop.f32.mrb[0].mxu0
        %v818 = vadd.f32 %v763, %v817
        %v819 = vpop.f32.mrb[0].mxu0
        %820 = vdwg.mxu0
        %v821 = vpack.c.bf16 %v815, %v815
        %v822 = vpack.c.bf16 %v818, %v818
        %824 = vrot.lane.b32.xlu0 %v821, 96
        %v825 = vpop.permute.xlu0 %824
        %vm826 = vcmask 64512
        %v828 = vsel %vm826, %v821, 0
        %v831 = vsel %vm826, %v825, 0
        %833 = vmatprep.subr.bf16.mxu0 0
        %834 = vmatpush1.bf16.xpose.msra.mxu0 %v831
        %835 = vmatprep.subr.bf16.mxu0 0
        %836 = vmatpush1.bf16.xpose.msra.mxu0 0
        %837 = vmatprep.subr.bf16.mxu0 0
        %838 = vmatpush1.bf16.xpose.msra.mxu0 0
        %839 = vmatprep.subr.bf16.mxu0 0
        %840 = vmatpush1.bf16.xpose.msra.mxu0 0
        %841 = vmatprep.subr.bf16.mxu0 0
        %842 = vmatpush1.bf16.xpose.msra.mxu0 0
        %843 = vmatprep.subr.bf16.mxu0 0
        %844 = vmatpush1.bf16.xpose.msra.mxu0 0
        %845 = vmatprep.subr.bf16.mxu0 0
        %846 = vmatpush1.bf16.xpose.msra.mxu0 0
        %847 = vmatprep.subr.bf16.mxu0 0
        %848 = vmatpush1.bf16.xpose.msra.mxu0 0
        %849 = vmatprep.subr.bf16.mxu0 0
        %850 = vmatpush1.bf16.xpose.msra.mxu0 0
        %851 = vmatprep.subr.bf16.mxu0 0
        %852 = vmatpush1.bf16.xpose.msra.mxu0 0
        %853 = vmatprep.subr.bf16.mxu0 0
        %854 = vmatpush1.bf16.xpose.msra.mxu0 0
        %855 = vmatprep.subr.bf16.mxu0 0
        %856 = vmatpush1.bf16.xpose.msra.mxu0 0
        %857 = vmatprep.subr.bf16.mxu0 0
        %858 = vmatpush1.bf16.xpose.msra.mxu0 0
        %859 = vmatprep.subr.bf16.mxu0 0
        %860 = vmatpush1.bf16.xpose.msra.mxu0 0
        %861 = vmatprep.subr.bf16.mxu0 0
        %862 = vmatpush1.bf16.xpose.msra.mxu0 0
        %863 = vmatprep.subr.bf16.mxu0 0
        %864 = vmatpush1.bf16.xpose.msra.mxu0 0
        %865 = vmatprep.mubr.bf16.mxu0 0
        %866 = vmatmul.mubr.bf16.gmra.mrb[0].mxu0 %v828
        %v867 = vpop.f32.mrb[0].mxu0
        %v868 = vadd.f32 0.0, %v867
        %v869 = vpop.f32.mrb[0].mxu0
        %v870 = vpop.f32.mrb[0].mxu0
        %v871 = vpop.f32.mrb[0].mxu0
        %872 = vdwg.mxu0
        %874 = vrot.lane.b32.xlu0 %v822, 96
        %v875 = vpop.permute.xlu0 %874
        %v877 = vsel %vm826, %v822, 0
        %v880 = vsel %vm826, %v875, 0
        %882 = vmatprep.subr.bf16.mxu0 0
        %883 = vmatpush1.bf16.xpose.msra.mxu0 %v880
        %884 = vmatprep.subr.bf16.mxu0 0
        %885 = vmatpush1.bf16.xpose.msra.mxu0 0
        %886 = vmatprep.subr.bf16.mxu0 0
        %887 = vmatpush1.bf16.xpose.msra.mxu0 0
        %888 = vmatprep.subr.bf16.mxu0 0
        %889 = vmatpush1.bf16.xpose.msra.mxu0 0
        %890 = vmatprep.subr.bf16.mxu0 0
        %891 = vmatpush1.bf16.xpose.msra.mxu0 0
        %892 = vmatprep.subr.bf16.mxu0 0
        %893 = vmatpush1.bf16.xpose.msra.mxu0 0
        %894 = vmatprep.subr.bf16.mxu0 0
        %895 = vmatpush1.bf16.xpose.msra.mxu0 0
        %896 = vmatprep.subr.bf16.mxu0 0
        %897 = vmatpush1.bf16.xpose.msra.mxu0 0
        %898 = vmatprep.subr.bf16.mxu0 0
        %899 = vmatpush1.bf16.xpose.msra.mxu0 0
        %900 = vmatprep.subr.bf16.mxu0 0
        %901 = vmatpush1.bf16.xpose.msra.mxu0 0
        %902 = vmatprep.subr.bf16.mxu0 0
        %903 = vmatpush1.bf16.xpose.msra.mxu0 0
        %904 = vmatprep.subr.bf16.mxu0 0
        %905 = vmatpush1.bf16.xpose.msra.mxu0 0
        %906 = vmatprep.subr.bf16.mxu0 0
        %907 = vmatpush1.bf16.xpose.msra.mxu0 0
        %908 = vmatprep.subr.bf16.mxu0 0
        %909 = vmatpush1.bf16.xpose.msra.mxu0 0
        %910 = vmatprep.subr.bf16.mxu0 0
        %911 = vmatpush1.bf16.xpose.msra.mxu0 0
        %912 = vmatprep.subr.bf16.mxu0 0
        %913 = vmatpush1.bf16.xpose.msra.mxu0 0
        %914 = vmatprep.mubr.bf16.mxu0 0
        %915 = vmatmul.mubr.bf16.gmra.mrb[0].mxu0 %v877
        %v916 = vpop.f32.mrb[0].mxu0
        %v917 = vadd.f32 0.0, %v916
        %v918 = vpop.f32.mrb[0].mxu0
        %v919 = vpop.f32.mrb[0].mxu0
        %v920 = vpop.f32.mrb[0].mxu0
        %921 = vdwg.mxu0
        %v922 = vsel %vm826, %v868, -inf
        %923 = vmax.xlane.f32.xlu0 %v922
        %v924 = vpop.xlane.xlu0 %923
        %v925 = vsel %vm826, %v917, -inf
        %926 = vmax.xlane.f32.xlu0 %v925
        %v927 = vpop.xlane.xlu0 %926
        %v928 = vsub.f32 %v868, %v924
        %v929 = vsub.f32 %v917, %v927
        %v930 = vmul.f32 %v928, 1.442695
        %v931 = vpow.pop %v930
        %v932 = vmul.f32 %v929, 1.442695
        %v933 = vpow.pop %v932
        %v934 = vsel %vm826, %v931, 0.0
        %935 = vadd.xlane.f32.xlu0 %v934
        %v936 = vpop.xlane.xlu0 %935
        %v937 = vsel %vm826, %v933, 0.0
        %938 = vadd.xlane.f32.xlu0 %v937
        %v939 = vpop.xlane.xlu0 %938
        %v940 = vrcp.pop %v936
        %v941 = vrcp.pop %v939
        %v942 = vmul.f32 %v931, %v940
        %v943 = vmul.f32 %v933, %v941
        %v944 = vpack.c.bf16 %v942, %v942
        %v945 = vpack.c.bf16 %v943, %v943
        %946 = vrot.lane.b32.xlu0 %v821, 64
        %v947 = vpop.permute.xlu0 %946
        %v949 = vsel %vm826, %v944, 0
        %vm951 = vcmask 1043456
        %v953 = vsel %vm951, %v947, 0
        %955 = vmatprep.subr.bf16.mxu0 0
        %956 = vmatpush1.bf16.msra.mxu0 %v953
        %957 = vmatprep.subr.bf16.mxu0 0
        %958 = vmatpush1.bf16.msra.mxu0 0
        %959 = vmatprep.subr.bf16.mxu0 0
        %960 = vmatpush1.bf16.msra.mxu0 0
        %961 = vmatprep.subr.bf16.mxu0 0
        %962 = vmatpush1.bf16.msra.mxu0 0
        %963 = vmatprep.subr.bf16.mxu0 0
        %964 = vmatpush1.bf16.msra.mxu0 0
        %965 = vmatprep.subr.bf16.mxu0 0
        %966 = vmatpush1.bf16.msra.mxu0 0
        %967 = vmatprep.subr.bf16.mxu0 0
        %968 = vmatpush1.bf16.msra.mxu0 0
        %969 = vmatprep.subr.bf16.mxu0 0
        %970 = vmatpush1.bf16.msra.mxu0 0
        %971 = vmatprep.subr.bf16.mxu0 0
        %972 = vmatpush1.bf16.msra.mxu0 0
        %973 = vmatprep.subr.bf16.mxu0 0
        %974 = vmatpush1.bf16.msra.mxu0 0
        %975 = vmatprep.subr.bf16.mxu0 0
        %976 = vmatpush1.bf16.msra.mxu0 0
        %977 = vmatprep.subr.bf16.mxu0 0
        %978 = vmatpush1.bf16.msra.mxu0 0
        %979 = vmatprep.subr.bf16.mxu0 0
        %980 = vmatpush1.bf16.msra.mxu0 0
        %981 = vmatprep.subr.bf16.mxu0 0
        %982 = vmatpush1.bf16.msra.mxu0 0
        %983 = vmatprep.subr.bf16.mxu0 0
        %984 = vmatpush1.bf16.msra.mxu0 0
        %985 = vmatprep.subr.bf16.mxu0 0
        %986 = vmatpush1.bf16.msra.mxu0 0
        %987 = vmatprep.mubr.bf16.mxu0 0
        %988 = vmatmul.mubr.bf16.gmra.mrb[0].mxu0 %v949
        %v989 = vpop.f32.mrb[0].mxu0
        %v990 = vadd.f32 0.0, %v989
        %v991 = vpop.f32.mrb[0].mxu0
        %v992 = vpop.f32.mrb[0].mxu0
        %v993 = vpop.f32.mrb[0].mxu0
        %994 = vdwg.mxu0
        %995 = vrot.lane.b32.xlu0 %v822, 64
        %v996 = vpop.permute.xlu0 %995
        %v998 = vsel %vm826, %v945, 0
        %v1001 = vsel %vm951, %v996, 0
        %1003 = vmatprep.subr.bf16.mxu0 0
        %1004 = vmatpush1.bf16.msra.mxu0 %v1001
        %1005 = vmatprep.subr.bf16.mxu0 0
        %1006 = vmatpush1.bf16.msra.mxu0 0
        %1007 = vmatprep.subr.bf16.mxu0 0
        %1008 = vmatpush1.bf16.msra.mxu0 0
        %1009 = vmatprep.subr.bf16.mxu0 0
        %1010 = vmatpush1.bf16.msra.mxu0 0
        %1011 = vmatprep.subr.bf16.mxu0 0
        %1012 = vmatpush1.bf16.msra.mxu0 0
        %1013 = vmatprep.subr.bf16.mxu0 0
        %1014 = vmatpush1.bf16.msra.mxu0 0
        %1015 = vmatprep.subr.bf16.mxu0 0
        %1016 = vmatpush1.bf16.msra.mxu0 0
        %1017 = vmatprep.subr.bf16.mxu0 0
        %1018 = vmatpush1.bf16.msra.mxu0 0
        %1019 = vmatprep.subr.bf16.mxu0 0
        %1020 = vmatpush1.bf16.msra.mxu0 0
        %1021 = vmatprep.subr.bf16.mxu0 0
        %1022 = vmatpush1.bf16.msra.mxu0 0
        %1023 = vmatprep.subr.bf16.mxu0 0
        %1024 = vmatpush1.bf16.msra.mxu0 0
        %1025 = vmatprep.subr.bf16.mxu0 0
        %1026 = vmatpush1.bf16.msra.mxu0 0
        %1027 = vmatprep.subr.bf16.mxu0 0
        %1028 = vmatpush1.bf16.msra.mxu0 0
        %1029 = vmatprep.subr.bf16.mxu0 0
        %1030 = vmatpush1.bf16.msra.mxu0 0
        %1031 = vmatprep.subr.bf16.mxu0 0
        %1032 = vmatpush1.bf16.msra.mxu0 0
        %1033 = vmatprep.subr.bf16.mxu0 0
        %1034 = vmatpush1.bf16.msra.mxu0 0
        %1035 = vmatprep.mubr.bf16.mxu0 0
        %1036 = vmatmul.mubr.bf16.gmra.mrb[0].mxu0 %v998
        %v1037 = vpop.f32.mrb[0].mxu0
        %v1038 = vadd.f32 0.0, %v1037
        %v1039 = vpop.f32.mrb[0].mxu0
        %v1040 = vpop.f32.mrb[0].mxu0
        %v1041 = vpop.f32.mrb[0].mxu0
        %1042 = vdwg.mxu0
        %1043 = vst.msk [vmem:[#allocation3] sm:$0xff] %vm826, %v990
        %1044 = vst.msk [vmem:[#allocation3 + $0x8] sm:$0xff] %vm826, %v1038
        %1045 = vrot.lane.b32.xlu0 %v821, 120
        %v1046 = vpop.permute.xlu0 %1045
        %1047 = vrot.lane.b32.xlu0 %v821, 88
        %v1048 = vpop.permute.xlu0 %1047
        %v1050 = vsel %vm826, %v1046, 0
        %v1053 = vsel %vm826, %v1048, 0
        %1055 = vmatprep.subr.bf16.mxu0 0
        %1056 = vmatpush1.bf16.xpose.msra.mxu0 %v1053
        %1057 = vmatprep.subr.bf16.mxu0 0
        %1058 = vmatpush1.bf16.xpose.msra.mxu0 0
        %1059 = vmatprep.subr.bf16.mxu0 0
        %1060 = vmatpush1.bf16.xpose.msra.mxu0 0
        %1061 = vmatprep.subr.bf16.mxu0 0
        %1062 = vmatpush1.bf16.xpose.msra.mxu0 0
        %1063 = vmatprep.subr.bf16.mxu0 0
        %1064 = vmatpush1.bf16.xpose.msra.mxu0 0
        %1065 = vmatprep.subr.bf16.mxu0 0
        %1066 = vmatpush1.bf16.xpose.msra.mxu0 0
        %1067 = vmatprep.subr.bf16.mxu0 0
        %1068 = vmatpush1.bf16.xpose.msra.mxu0 0
        %1069 = vmatprep.subr.bf16.mxu0 0
        %1070 = vmatpush1.bf16.xpose.msra.mxu0 0
        %1071 = vmatprep.subr.bf16.mxu0 0
        %1072 = vmatpush1.bf16.xpose.msra.mxu0 0
        %1073 = vmatprep.subr.bf16.mxu0 0
        %1074 = vmatpush1.bf16.xpose.msra.mxu0 0
        %1075 = vmatprep.subr.bf16.mxu0 0
        %1076 = vmatpush1.bf16.xpose.msra.mxu0 0
        %1077 = vmatprep.subr.bf16.mxu0 0
        %1078 = vmatpush1.bf16.xpose.msra.mxu0 0
        %1079 = vmatprep.subr.bf16.mxu0 0
        %1080 = vmatpush1.bf16.xpose.msra.mxu0 0
        %1081 = vmatprep.subr.bf16.mxu0 0
        %1082 = vmatpush1.bf16.xpose.msra.mxu0 0
        %1083 = vmatprep.subr.bf16.mxu0 0
        %1084 = vmatpush1.bf16.xpose.msra.mxu0 0
        %1085 = vmatprep.subr.bf16.mxu0 0
        %1086 = vmatpush1.bf16.xpose.msra.mxu0 0
        %1087 = vmatprep.mubr.bf16.mxu0 0
        %1088 = vmatmul.mubr.bf16.gmra.mrb[0].mxu0 %v1050
        %v1089 = vpop.f32.mrb[0].mxu0
        %v1090 = vadd.f32 0.0, %v1089
        %v1091 = vpop.f32.mrb[0].mxu0
        %v1092 = vpop.f32.mrb[0].mxu0
        %v1093 = vpop.f32.mrb[0].mxu0
        %1094 = vdwg.mxu0
        %1095 = vrot.lane.b32.xlu0 %v822, 120
        %v1096 = vpop.permute.xlu0 %1095
        %1097 = vrot.lane.b32.xlu0 %v822, 88
        %v1098 = vpop.permute.xlu0 %1097
        %v1100 = vsel %vm826, %v1096, 0
        %v1103 = vsel %vm826, %v1098, 0
        %1105 = vmatprep.subr.bf16.mxu0 0
        %1106 = vmatpush1.bf16.xpose.msra.mxu0 %v1103
        %1107 = vmatprep.subr.bf16.mxu0 0
        %1108 = vmatpush1.bf16.xpose.msra.mxu0 0
        %1109 = vmatprep.subr.bf16.mxu0 0
        %1110 = vmatpush1.bf16.xpose.msra.mxu0 0
        %1111 = vmatprep.subr.bf16.mxu0 0
        %1112 = vmatpush1.bf16.xpose.msra.mxu0 0
        %1113 = vmatprep.subr.bf16.mxu0 0
        %1114 = vmatpush1.bf16.xpose.msra.mxu0 0
        %1115 = vmatprep.subr.bf16.mxu0 0
        %1116 = vmatpush1.bf16.xpose.msra.mxu0 0
        %1117 = vmatprep.subr.bf16.mxu0 0
        %1118 = vmatpush1.bf16.xpose.msra.mxu0 0
        %1119 = vmatprep.subr.bf16.mxu0 0
        %1120 = vmatpush1.bf16.xpose.msra.mxu0 0
        %1121 = vmatprep.subr.bf16.mxu0 0
        %1122 = vmatpush1.bf16.xpose.msra.mxu0 0
        %1123 = vmatprep.subr.bf16.mxu0 0
        %1124 = vmatpush1.bf16.xpose.msra.mxu0 0
        %1125 = vmatprep.subr.bf16.mxu0 0
        %1126 = vmatpush1.bf16.xpose.msra.mxu0 0
        %1127 = vmatprep.subr.bf16.mxu0 0
        %1128 = vmatpush1.bf16.xpose.msra.mxu0 0
        %1129 = vmatprep.subr.bf16.mxu0 0
        %1130 = vmatpush1.bf16.xpose.msra.mxu0 0
        %1131 = vmatprep.subr.bf16.mxu0 0
        %1132 = vmatpush1.bf16.xpose.msra.mxu0 0
        %1133 = vmatprep.subr.bf16.mxu0 0
        %1134 = vmatpush1.bf16.xpose.msra.mxu0 0
        %1135 = vmatprep.subr.bf16.mxu0 0
        %1136 = vmatpush1.bf16.xpose.msra.mxu0 0
        %1137 = vmatprep.mubr.bf16.mxu0 0
        %1138 = vmatmul.mubr.bf16.gmra.mrb[0].mxu0 %v1100
        %v1139 = vpop.f32.mrb[0].mxu0
        %v1140 = vadd.f32 0.0, %v1139
        %v1141 = vpop.f32.mrb[0].mxu0
        %v1142 = vpop.f32.mrb[0].mxu0
        %v1143 = vpop.f32.mrb[0].mxu0
        %1144 = vdwg.mxu0
        %v1145 = vsel %vm826, %v1090, -inf
        %1146 = vmax.xlane.f32.xlu0 %v1145
        %v1147 = vpop.xlane.xlu0 %1146
        %v1148 = vsel %vm826, %v1140, -inf
        %1149 = vmax.xlane.f32.xlu0 %v1148
        %v1150 = vpop.xlane.xlu0 %1149
        %v1151 = vsub.f32 %v1090, %v1147
        %v1152 = vsub.f32 %v1140, %v1150
        %v1153 = vmul.f32 %v1151, 1.442695
        %v1154 = vpow.pop %v1153
        %v1155 = vmul.f32 %v1152, 1.442695
        %v1156 = vpow.pop %v1155
        %v1157 = vsel %vm826, %v1154, 0.0
        %1158 = vadd.xlane.f32.xlu0 %v1157
        %v1159 = vpop.xlane.xlu0 %1158
        %v1160 = vsel %vm826, %v1156, 0.0
        %1161 = vadd.xlane.f32.xlu0 %v1160
        %v1162 = vpop.xlane.xlu0 %1161
        %v1163 = vrcp.pop %v1159
        %v1164 = vrcp.pop %v1162
        %v1165 = vmul.f32 %v1154, %v1163
        %v1166 = vmul.f32 %v1156, %v1164
        %v1167 = vpack.c.bf16 %v1165, %v1165
        %v1168 = vpack.c.bf16 %v1166, %v1166
        %1169 = vrot.lane.b32.xlu0 %v821, 56
        %v1170 = vpop.permute.xlu0 %1169
        %v1172 = vsel %vm826, %v1167, 0
        %v1175 = vsel %vm951, %v1170, 0
        %1177 = vmatprep.subr.bf16.mxu0 0
        %1178 = vmatpush1.bf16.msra.mxu0 %v1175
        %1179 = vmatprep.subr.bf16.mxu0 0
        %1180 = vmatpush1.bf16.msra.mxu0 0
        %1181 = vmatprep.subr.bf16.mxu0 0
        %1182 = vmatpush1.bf16.msra.mxu0 0
        %1183 = vmatprep.subr.bf16.mxu0 0
        %1184 = vmatpush1.bf16.msra.mxu0 0
        %1185 = vmatprep.subr.bf16.mxu0 0
        %1186 = vmatpush1.bf16.msra.mxu0 0
        %1187 = vmatprep.subr.bf16.mxu0 0
        %1188 = vmatpush1.bf16.msra.mxu0 0
        %1189 = vmatprep.subr.bf16.mxu0 0
        %1190 = vmatpush1.bf16.msra.mxu0 0
        %1191 = vmatprep.subr.bf16.mxu0 0
        %1192 = vmatpush1.bf16.msra.mxu0 0
        %1193 = vmatprep.subr.bf16.mxu0 0
        %1194 = vmatpush1.bf16.msra.mxu0 0
        %1195 = vmatprep.subr.bf16.mxu0 0
        %1196 = vmatpush1.bf16.msra.mxu0 0
        %1197 = vmatprep.subr.bf16.mxu0 0
        %1198 = vmatpush1.bf16.msra.mxu0 0
        %1199 = vmatprep.subr.bf16.mxu0 0
        %1200 = vmatpush1.bf16.msra.mxu0 0
        %1201 = vmatprep.subr.bf16.mxu0 0
        %1202 = vmatpush1.bf16.msra.mxu0 0
        %1203 = vmatprep.subr.bf16.mxu0 0
        %1204 = vmatpush1.bf16.msra.mxu0 0
        %1205 = vmatprep.subr.bf16.mxu0 0
        %1206 = vmatpush1.bf16.msra.mxu0 0
        %1207 = vmatprep.subr.bf16.mxu0 0
        %1208 = vmatpush1.bf16.msra.mxu0 0
        %1209 = vmatprep.mubr.bf16.mxu0 0
        %1210 = vmatmul.mubr.bf16.gmra.mrb[0].mxu0 %v1172
        %v1211 = vpop.f32.mrb[0].mxu0
        %v1212 = vadd.f32 0.0, %v1211
        %v1213 = vpop.f32.mrb[0].mxu0
        %v1214 = vpop.f32.mrb[0].mxu0
        %v1215 = vpop.f32.mrb[0].mxu0
        %1216 = vdwg.mxu0
        %1217 = vrot.lane.b32.xlu0 %v822, 56
        %v1218 = vpop.permute.xlu0 %1217
        %v1220 = vsel %vm826, %v1168, 0
        %v1223 = vsel %vm951, %v1218, 0
        %1225 = vmatprep.subr.bf16.mxu0 0
        %1226 = vmatpush1.bf16.msra.mxu0 %v1223
        %1227 = vmatprep.subr.bf16.mxu0 0
        %1228 = vmatpush1.bf16.msra.mxu0 0
        %1229 = vmatprep.subr.bf16.mxu0 0
        %1230 = vmatpush1.bf16.msra.mxu0 0
        %1231 = vmatprep.subr.bf16.mxu0 0
        %1232 = vmatpush1.bf16.msra.mxu0 0
        %1233 = vmatprep.subr.bf16.mxu0 0
        %1234 = vmatpush1.bf16.msra.mxu0 0
        %1235 = vmatprep.subr.bf16.mxu0 0
        %1236 = vmatpush1.bf16.msra.mxu0 0
        %1237 = vmatprep.subr.bf16.mxu0 0
        %1238 = vmatpush1.bf16.msra.mxu0 0
        %1239 = vmatprep.subr.bf16.mxu0 0
        %1240 = vmatpush1.bf16.msra.mxu0 0
        %1241 = vmatprep.subr.bf16.mxu0 0
        %1242 = vmatpush1.bf16.msra.mxu0 0
        %1243 = vmatprep.subr.bf16.mxu0 0
        %1244 = vmatpush1.bf16.msra.mxu0 0
        %1245 = vmatprep.subr.bf16.mxu0 0
        %1246 = vmatpush1.bf16.msra.mxu0 0
        %1247 = vmatprep.subr.bf16.mxu0 0
        %1248 = vmatpush1.bf16.msra.mxu0 0
        %1249 = vmatprep.subr.bf16.mxu0 0
        %1250 = vmatpush1.bf16.msra.mxu0 0
        %1251 = vmatprep.subr.bf16.mxu0 0
        %1252 = vmatpush1.bf16.msra.mxu0 0
        %1253 = vmatprep.subr.bf16.mxu0 0
        %1254 = vmatpush1.bf16.msra.mxu0 0
        %1255 = vmatprep.subr.bf16.mxu0 0
        %1256 = vmatpush1.bf16.msra.mxu0 0
        %1257 = vmatprep.mubr.bf16.mxu0 0
        %1258 = vmatmul.mubr.bf16.gmra.mrb[0].mxu0 %v1220
        %v1259 = vpop.f32.mrb[0].mxu0
        %v1260 = vadd.f32 0.0, %v1259
        %v1261 = vpop.f32.mrb[0].mxu0
        %v1262 = vpop.f32.mrb[0].mxu0
        %v1263 = vpop.f32.mrb[0].mxu0
        %1264 = vdwg.mxu0
        %1267 = vrot.lane.b32.xlu0 %v1212, 8
        %v1268 = vpop.permute.xlu0 %1267
        %1269 = vrot.lane.b32.xlu0 %v1260, 8
        %v1270 = vpop.permute.xlu0 %1269
        %vm1273 = vcmask 130112
        %1274 = vst.msk [vmem:[#allocation3] sm:$0xff] %vm1273, %v1268
        %1275 = vst.msk [vmem:[#allocation3 + $0x8] sm:$0xff] %vm1273, %v1270
        %1276 = vrot.lane.b32.xlu0 %v821, 112
        %v1277 = vpop.permute.xlu0 %1276
        %1278 = vrot.lane.b32.xlu0 %v821, 80
        %v1279 = vpop.permute.xlu0 %1278
        %v1281 = vsel %vm826, %v1277, 0
        %v1284 = vsel %vm826, %v1279, 0
        %1286 = vmatprep.subr.bf16.mxu0 0
        %1287 = vmatpush1.bf16.xpose.msra.mxu0 %v1284
        %1288 = vmatprep.subr.bf16.mxu0 0
        %1289 = vmatpush1.bf16.xpose.msra.mxu0 0
        %1290 = vmatprep.subr.bf16.mxu0 0
        %1291 = vmatpush1.bf16.xpose.msra.mxu0 0
        %1292 = vmatprep.subr.bf16.mxu0 0
        %1293 = vmatpush1.bf16.xpose.msra.mxu0 0
        %1294 = vmatprep.subr.bf16.mxu0 0
        %1295 = vmatpush1.bf16.xpose.msra.mxu0 0
        %1296 = vmatprep.subr.bf16.mxu0 0
        %1297 = vmatpush1.bf16.xpose.msra.mxu0 0
        %1298 = vmatprep.subr.bf16.mxu0 0
        %1299 = vmatpush1.bf16.xpose.msra.mxu0 0
        %1300 = vmatprep.subr.bf16.mxu0 0
        %1301 = vmatpush1.bf16.xpose.msra.mxu0 0
        %1302 = vmatprep.subr.bf16.mxu0 0
        %1303 = vmatpush1.bf16.xpose.msra.mxu0 0
        %1304 = vmatprep.subr.bf16.mxu0 0
        %1305 = vmatpush1.bf16.xpose.msra.mxu0 0
        %1306 = vmatprep.subr.bf16.mxu0 0
        %1307 = vmatpush1.bf16.xpose.msra.mxu0 0
        %1308 = vmatprep.subr.bf16.mxu0 0
        %1309 = vmatpush1.bf16.xpose.msra.mxu0 0
        %1310 = vmatprep.subr.bf16.mxu0 0
        %1311 = vmatpush1.bf16.xpose.msra.mxu0 0
        %1312 = vmatprep.subr.bf16.mxu0 0
        %1313 = vmatpush1.bf16.xpose.msra.mxu0 0
        %1314 = vmatprep.subr.bf16.mxu0 0
        %1315 = vmatpush1.bf16.xpose.msra.mxu0 0
        %1316 = vmatprep.subr.bf16.mxu0 0
        %1317 = vmatpush1.bf16.xpose.msra.mxu0 0
        %1318 = vmatprep.mubr.bf16.mxu0 0
        %1319 = vmatmul.mubr.bf16.gmra.mrb[0].mxu0 %v1281
        %v1320 = vpop.f32.mrb[0].mxu0
        %v1321 = vadd.f32 0.0, %v1320
        %v1322 = vpop.f32.mrb[0].mxu0
        %v1323 = vpop.f32.mrb[0].mxu0
        %v1324 = vpop.f32.mrb[0].mxu0
        %1325 = vdwg.mxu0
        %1326 = vrot.lane.b32.xlu0 %v822, 112
        %v1327 = vpop.permute.xlu0 %1326
        %1328 = vrot.lane.b32.xlu0 %v822, 80
        %v1329 = vpop.permute.xlu0 %1328
        %v1331 = vsel %vm826, %v1327, 0
        %v1334 = vsel %vm826, %v1329, 0
        %1336 = vmatprep.subr.bf16.mxu0 0
        %1337 = vmatpush1.bf16.xpose.msra.mxu0 %v1334
        %1338 = vmatprep.subr.bf16.mxu0 0
        %1339 = vmatpush1.bf16.xpose.msra.mxu0 0
        %1340 = vmatprep.subr.bf16.mxu0 0
        %1341 = vmatpush1.bf16.xpose.msra.mxu0 0
        %1342 = vmatprep.subr.bf16.mxu0 0
        %1343 = vmatpush1.bf16.xpose.msra.mxu0 0
        %1344 = vmatprep.subr.bf16.mxu0 0
        %1345 = vmatpush1.bf16.xpose.msra.mxu0 0
        %1346 = vmatprep.subr.bf16.mxu0 0
        %1347 = vmatpush1.bf16.xpose.msra.mxu0 0
        %1348 = vmatprep.subr.bf16.mxu0 0
        %1349 = vmatpush1.bf16.xpose.msra.mxu0 0
        %1350 = vmatprep.subr.bf16.mxu0 0
        %1351 = vmatpush1.bf16.xpose.msra.mxu0 0
        %1352 = vmatprep.subr.bf16.mxu0 0
        %1353 = vmatpush1.bf16.xpose.msra.mxu0 0
        %1354 = vmatprep.subr.bf16.mxu0 0
        %1355 = vmatpush1.bf16.xpose.msra.mxu0 0
        %1356 = vmatprep.subr.bf16.mxu0 0
        %1357 = vmatpush1.bf16.xpose.msra.mxu0 0
        %1358 = vmatprep.subr.bf16.mxu0 0
        %1359 = vmatpush1.bf16.xpose.msra.mxu0 0
        %1360 = vmatprep.subr.bf16.mxu0 0
        %1361 = vmatpush1.bf16.xpose.msra.mxu0 0
        %1362 = vmatprep.subr.bf16.mxu0 0
        %1363 = vmatpush1.bf16.xpose.msra.mxu0 0
        %1364 = vmatprep.subr.bf16.mxu0 0
        %1365 = vmatpush1.bf16.xpose.msra.mxu0 0
        %1366 = vmatprep.subr.bf16.mxu0 0
        %1367 = vmatpush1.bf16.xpose.msra.mxu0 0
        %1368 = vmatprep.mubr.bf16.mxu0 0
        %1369 = vmatmul.mubr.bf16.gmra.mrb[0].mxu0 %v1331
        %v1370 = vpop.f32.mrb[0].mxu0
        %v1371 = vadd.f32 0.0, %v1370
        %v1372 = vpop.f32.mrb[0].mxu0
        %v1373 = vpop.f32.mrb[0].mxu0
        %v1374 = vpop.f32.mrb[0].mxu0
        %1375 = vdwg.mxu0
        %v1376 = vsel %vm826, %v1321, -inf
        %1377 = vmax.xlane.f32.xlu0 %v1376
        %v1378 = vpop.xlane.xlu0 %1377
        %v1379 = vsel %vm826, %v1371, -inf
        %1380 = vmax.xlane.f32.xlu0 %v1379
        %v1381 = vpop.xlane.xlu0 %1380
        %v1382 = vsub.f32 %v1321, %v1378
        %v1383 = vsub.f32 %v1371, %v1381
        %v1384 = vmul.f32 %v1382, 1.442695
        %v1385 = vpow.pop %v1384
        %v1386 = vmul.f32 %v1383, 1.442695
        %v1387 = vpow.pop %v1386
        %v1388 = vsel %vm826, %v1385, 0.0
        %1389 = vadd.xlane.f32.xlu0 %v1388
        %v1390 = vpop.xlane.xlu0 %1389
        %v1391 = vsel %vm826, %v1387, 0.0
        %1392 = vadd.xlane.f32.xlu0 %v1391
        %v1393 = vpop.xlane.xlu0 %1392
        %v1394 = vrcp.pop %v1390
        %v1395 = vrcp.pop %v1393
        %v1396 = vmul.f32 %v1385, %v1394
        %v1397 = vmul.f32 %v1387, %v1395
        %v1398 = vpack.c.bf16 %v1396, %v1396
        %v1399 = vpack.c.bf16 %v1397, %v1397
        %1400 = vrot.lane.b32.xlu0 %v821, 48
        %v1401 = vpop.permute.xlu0 %1400
        %v1403 = vsel %vm826, %v1398, 0
        %v1406 = vsel %vm951, %v1401, 0
        %1408 = vmatprep.subr.bf16.mxu0 0
        %1409 = vmatpush1.bf16.msra.mxu0 %v1406
        %1410 = vmatprep.subr.bf16.mxu0 0
        %1411 = vmatpush1.bf16.msra.mxu0 0
        %1412 = vmatprep.subr.bf16.mxu0 0
        %1413 = vmatpush1.bf16.msra.mxu0 0
        %1414 = vmatprep.subr.bf16.mxu0 0
        %1415 = vmatpush1.bf16.msra.mxu0 0
        %1416 = vmatprep.subr.bf16.mxu0 0
        %1417 = vmatpush1.bf16.msra.mxu0 0
        %1418 = vmatprep.subr.bf16.mxu0 0
        %1419 = vmatpush1.bf16.msra.mxu0 0
        %1420 = vmatprep.subr.bf16.mxu0 0
        %1421 = vmatpush1.bf16.msra.mxu0 0
        %1422 = vmatprep.subr.bf16.mxu0 0
        %1423 = vmatpush1.bf16.msra.mxu0 0
        %1424 = vmatprep.subr.bf16.mxu0 0
        %1425 = vmatpush1.bf16.msra.mxu0 0
        %1426 = vmatprep.subr.bf16.mxu0 0
        %1427 = vmatpush1.bf16.msra.mxu0 0
        %1428 = vmatprep.subr.bf16.mxu0 0
        %1429 = vmatpush1.bf16.msra.mxu0 0
        %1430 = vmatprep.subr.bf16.mxu0 0
        %1431 = vmatpush1.bf16.msra.mxu0 0
        %1432 = vmatprep.subr.bf16.mxu0 0
        %1433 = vmatpush1.bf16.msra.mxu0 0
        %1434 = vmatprep.subr.bf16.mxu0 0
        %1435 = vmatpush1.bf16.msra.mxu0 0
        %1436 = vmatprep.subr.bf16.mxu0 0
        %1437 = vmatpush1.bf16.msra.mxu0 0
        %1438 = vmatprep.subr.bf16.mxu0 0
        %1439 = vmatpush1.bf16.msra.mxu0 0
        %1440 = vmatprep.mubr.bf16.mxu0 0
        %1441 = vmatmul.mubr.bf16.gmra.mrb[0].mxu0 %v1403
        %v1442 = vpop.f32.mrb[0].mxu0
        %v1443 = vadd.f32 0.0, %v1442
        %v1444 = vpop.f32.mrb[0].mxu0
        %v1445 = vpop.f32.mrb[0].mxu0
        %v1446 = vpop.f32.mrb[0].mxu0
        %1447 = vdwg.mxu0
        %1448 = vrot.lane.b32.xlu0 %v822, 48
        %v1449 = vpop.permute.xlu0 %1448
        %v1451 = vsel %vm826, %v1399, 0
        %v1454 = vsel %vm951, %v1449, 0
        %1456 = vmatprep.subr.bf16.mxu0 0
        %1457 = vmatpush1.bf16.msra.mxu0 %v1454
        %1458 = vmatprep.subr.bf16.mxu0 0
        %1459 = vmatpush1.bf16.msra.mxu0 0
        %1460 = vmatprep.subr.bf16.mxu0 0
        %1461 = vmatpush1.bf16.msra.mxu0 0
        %1462 = vmatprep.subr.bf16.mxu0 0
        %1463 = vmatpush1.bf16.msra.mxu0 0
        %1464 = vmatprep.subr.bf16.mxu0 0
        %1465 = vmatpush1.bf16.msra.mxu0 0
        %1466 = vmatprep.subr.bf16.mxu0 0
        %1467 = vmatpush1.bf16.msra.mxu0 0
        %1468 = vmatprep.subr.bf16.mxu0 0
        %1469 = vmatpush1.bf16.msra.mxu0 0
        %1470 = vmatprep.subr.bf16.mxu0 0
        %1471 = vmatpush1.bf16.msra.mxu0 0
        %1472 = vmatprep.subr.bf16.mxu0 0
        %1473 = vmatpush1.bf16.msra.mxu0 0
        %1474 = vmatprep.subr.bf16.mxu0 0
        %1475 = vmatpush1.bf16.msra.mxu0 0
        %1476 = vmatprep.subr.bf16.mxu0 0
        %1477 = vmatpush1.bf16.msra.mxu0 0
        %1478 = vmatprep.subr.bf16.mxu0 0
        %1479 = vmatpush1.bf16.msra.mxu0 0
        %1480 = vmatprep.subr.bf16.mxu0 0
        %1481 = vmatpush1.bf16.msra.mxu0 0
        %1482 = vmatprep.subr.bf16.mxu0 0
        %1483 = vmatpush1.bf16.msra.mxu0 0
        %1484 = vmatprep.subr.bf16.mxu0 0
        %1485 = vmatpush1.bf16.msra.mxu0 0
        %1486 = vmatprep.subr.bf16.mxu0 0
        %1487 = vmatpush1.bf16.msra.mxu0 0
        %1488 = vmatprep.mubr.bf16.mxu0 0
        %1489 = vmatmul.mubr.bf16.gmra.mrb[0].mxu0 %v1451
        %v1490 = vpop.f32.mrb[0].mxu0
        %v1491 = vadd.f32 0.0, %v1490
        %v1492 = vpop.f32.mrb[0].mxu0
        %v1493 = vpop.f32.mrb[0].mxu0
        %v1494 = vpop.f32.mrb[0].mxu0
        %1495 = vdwg.mxu0
        %1498 = vrot.lane.b32.xlu0 %v1443, 16
        %v1499 = vpop.permute.xlu0 %1498
        %1500 = vrot.lane.b32.xlu0 %v1491, 16
        %v1501 = vpop.permute.xlu0 %1500
        %vm1504 = vcmask 195712
        %1505 = vst.msk [vmem:[#allocation3] sm:$0xff] %vm1504, %v1499
        %1506 = vst.msk [vmem:[#allocation3 + $0x8] sm:$0xff] %vm1504, %v1501
        %1507 = vrot.lane.b32.xlu0 %v821, 104
        %v1508 = vpop.permute.xlu0 %1507
        %1509 = vrot.lane.b32.xlu0 %v821, 72
        %v1510 = vpop.permute.xlu0 %1509
        %v1512 = vsel %vm826, %v1508, 0
        %v1515 = vsel %vm826, %v1510, 0
        %1517 = vmatprep.subr.bf16.mxu0 0
        %1518 = vmatpush1.bf16.xpose.msra.mxu0 %v1515
        %1519 = vmatprep.subr.bf16.mxu0 0
        %1520 = vmatpush1.bf16.xpose.msra.mxu0 0
        %1521 = vmatprep.subr.bf16.mxu0 0
        %1522 = vmatpush1.bf16.xpose.msra.mxu0 0
        %1523 = vmatprep.subr.bf16.mxu0 0
        %1524 = vmatpush1.bf16.xpose.msra.mxu0 0
        %1525 = vmatprep.subr.bf16.mxu0 0
        %1526 = vmatpush1.bf16.xpose.msra.mxu0 0
        %1527 = vmatprep.subr.bf16.mxu0 0
        %1528 = vmatpush1.bf16.xpose.msra.mxu0 0
        %1529 = vmatprep.subr.bf16.mxu0 0
        %1530 = vmatpush1.bf16.xpose.msra.mxu0 0
        %1531 = vmatprep.subr.bf16.mxu0 0
        %1532 = vmatpush1.bf16.xpose.msra.mxu0 0
        %1533 = vmatprep.subr.bf16.mxu0 0
        %1534 = vmatpush1.bf16.xpose.msra.mxu0 0
        %1535 = vmatprep.subr.bf16.mxu0 0
        %1536 = vmatpush1.bf16.xpose.msra.mxu0 0
        %1537 = vmatprep.subr.bf16.mxu0 0
        %1538 = vmatpush1.bf16.xpose.msra.mxu0 0
        %1539 = vmatprep.subr.bf16.mxu0 0
        %1540 = vmatpush1.bf16.xpose.msra.mxu0 0
        %1541 = vmatprep.subr.bf16.mxu0 0
        %1542 = vmatpush1.bf16.xpose.msra.mxu0 0
        %1543 = vmatprep.subr.bf16.mxu0 0
        %1544 = vmatpush1.bf16.xpose.msra.mxu0 0
        %1545 = vmatprep.subr.bf16.mxu0 0
        %1546 = vmatpush1.bf16.xpose.msra.mxu0 0
        %1547 = vmatprep.subr.bf16.mxu0 0
        %1548 = vmatpush1.bf16.xpose.msra.mxu0 0
        %1549 = vmatprep.mubr.bf16.mxu0 0
        %1550 = vmatmul.mubr.bf16.gmra.mrb[0].mxu0 %v1512
        %v1551 = vpop.f32.mrb[0].mxu0
        %v1552 = vadd.f32 0.0, %v1551
        %v1553 = vpop.f32.mrb[0].mxu0
        %v1554 = vpop.f32.mrb[0].mxu0
        %v1555 = vpop.f32.mrb[0].mxu0
        %1556 = vdwg.mxu0
        %1557 = vrot.lane.b32.xlu0 %v822, 104
        %v1558 = vpop.permute.xlu0 %1557
        %1559 = vrot.lane.b32.xlu0 %v822, 72
        %v1560 = vpop.permute.xlu0 %1559
        %v1562 = vsel %vm826, %v1558, 0
        %v1565 = vsel %vm826, %v1560, 0
        %1567 = vmatprep.subr.bf16.mxu0 0
        %1568 = vmatpush1.bf16.xpose.msra.mxu0 %v1565
        %1569 = vmatprep.subr.bf16.mxu0 0
        %1570 = vmatpush1.bf16.xpose.msra.mxu0 0
        %1571 = vmatprep.subr.bf16.mxu0 0
        %1572 = vmatpush1.bf16.xpose.msra.mxu0 0
        %1573 = vmatprep.subr.bf16.mxu0 0
        %1574 = vmatpush1.bf16.xpose.msra.mxu0 0
        %1575 = vmatprep.subr.bf16.mxu0 0
        %1576 = vmatpush1.bf16.xpose.msra.mxu0 0
        %1577 = vmatprep.subr.bf16.mxu0 0
        %1578 = vmatpush1.bf16.xpose.msra.mxu0 0
        %1579 = vmatprep.subr.bf16.mxu0 0
        %1580 = vmatpush1.bf16.xpose.msra.mxu0 0
        %1581 = vmatprep.subr.bf16.mxu0 0
        %1582 = vmatpush1.bf16.xpose.msra.mxu0 0
        %1583 = vmatprep.subr.bf16.mxu0 0
        %1584 = vmatpush1.bf16.xpose.msra.mxu0 0
        %1585 = vmatprep.subr.bf16.mxu0 0
        %1586 = vmatpush1.bf16.xpose.msra.mxu0 0
        %1587 = vmatprep.subr.bf16.mxu0 0
        %1588 = vmatpush1.bf16.xpose.msra.mxu0 0
        %1589 = vmatprep.subr.bf16.mxu0 0
        %1590 = vmatpush1.bf16.xpose.msra.mxu0 0
        %1591 = vmatprep.subr.bf16.mxu0 0
        %1592 = vmatpush1.bf16.xpose.msra.mxu0 0
        %1593 = vmatprep.subr.bf16.mxu0 0
        %1594 = vmatpush1.bf16.xpose.msra.mxu0 0
        %1595 = vmatprep.subr.bf16.mxu0 0
        %1596 = vmatpush1.bf16.xpose.msra.mxu0 0
        %1597 = vmatprep.subr.bf16.mxu0 0
        %1598 = vmatpush1.bf16.xpose.msra.mxu0 0
        %1599 = vmatprep.mubr.bf16.mxu0 0
        %1600 = vmatmul.mubr.bf16.gmra.mrb[0].mxu0 %v1562
        %v1601 = vpop.f32.mrb[0].mxu0
        %v1602 = vadd.f32 0.0, %v1601
        %v1603 = vpop.f32.mrb[0].mxu0
        %v1604 = vpop.f32.mrb[0].mxu0
        %v1605 = vpop.f32.mrb[0].mxu0
        %1606 = vdwg.mxu0
        %v1607 = vsel %vm826, %v1552, -inf
        %1608 = vmax.xlane.f32.xlu0 %v1607
        %v1609 = vpop.xlane.xlu0 %1608
        %v1610 = vsel %vm826, %v1602, -inf
        %1611 = vmax.xlane.f32.xlu0 %v1610
        %v1612 = vpop.xlane.xlu0 %1611
        %v1613 = vsub.f32 %v1552, %v1609
        %v1614 = vsub.f32 %v1602, %v1612
        %v1615 = vmul.f32 %v1613, 1.442695
        %v1616 = vpow.pop %v1615
        %v1617 = vmul.f32 %v1614, 1.442695
        %v1618 = vpow.pop %v1617
        %v1619 = vsel %vm826, %v1616, 0.0
        %1620 = vadd.xlane.f32.xlu0 %v1619
        %v1621 = vpop.xlane.xlu0 %1620
        %v1622 = vsel %vm826, %v1618, 0.0
        %1623 = vadd.xlane.f32.xlu0 %v1622
        %v1624 = vpop.xlane.xlu0 %1623
        %v1625 = vrcp.pop %v1621
        %v1626 = vrcp.pop %v1624
        %v1627 = vmul.f32 %v1616, %v1625
        %v1628 = vmul.f32 %v1618, %v1626
        %v1629 = vpack.c.bf16 %v1627, %v1627
        %v1630 = vpack.c.bf16 %v1628, %v1628
        %1631 = vrot.lane.b32.xlu0 %v821, 40
        %v1632 = vpop.permute.xlu0 %1631
        %v1634 = vsel %vm826, %v1629, 0
        %v1637 = vsel %vm951, %v1632, 0
        %1639 = vmatprep.subr.bf16.mxu0 0
        %1640 = vmatpush1.bf16.msra.mxu0 %v1637
        %1641 = vmatprep.subr.bf16.mxu0 0
        %1642 = vmatpush1.bf16.msra.mxu0 0
        %1643 = vmatprep.subr.bf16.mxu0 0
        %1644 = vmatpush1.bf16.msra.mxu0 0
        %1645 = vmatprep.subr.bf16.mxu0 0
        %1646 = vmatpush1.bf16.msra.mxu0 0
        %1647 = vmatprep.subr.bf16.mxu0 0
        %1648 = vmatpush1.bf16.msra.mxu0 0
        %1649 = vmatprep.subr.bf16.mxu0 0
        %1650 = vmatpush1.bf16.msra.mxu0 0
        %1651 = vmatprep.subr.bf16.mxu0 0
        %1652 = vmatpush1.bf16.msra.mxu0 0
        %1653 = vmatprep.subr.bf16.mxu0 0
        %1654 = vmatpush1.bf16.msra.mxu0 0
        %1655 = vmatprep.subr.bf16.mxu0 0
        %1656 = vmatpush1.bf16.msra.mxu0 0
        %1657 = vmatprep.subr.bf16.mxu0 0
        %1658 = vmatpush1.bf16.msra.mxu0 0
        %1659 = vmatprep.subr.bf16.mxu0 0
        %1660 = vmatpush1.bf16.msra.mxu0 0
        %1661 = vmatprep.subr.bf16.mxu0 0
        %1662 = vmatpush1.bf16.msra.mxu0 0
        %1663 = vmatprep.subr.bf16.mxu0 0
        %1664 = vmatpush1.bf16.msra.mxu0 0
        %1665 = vmatprep.subr.bf16.mxu0 0
        %1666 = vmatpush1.bf16.msra.mxu0 0
        %1667 = vmatprep.subr.bf16.mxu0 0
        %1668 = vmatpush1.bf16.msra.mxu0 0
        %1669 = vmatprep.subr.bf16.mxu0 0
        %1670 = vmatpush1.bf16.msra.mxu0 0
        %1671 = vmatprep.mubr.bf16.mxu0 0
        %1672 = vmatmul.mubr.bf16.gmra.mrb[0].mxu0 %v1634
        %v1673 = vpop.f32.mrb[0].mxu0
        %v1674 = vadd.f32 0.0, %v1673
        %v1675 = vpop.f32.mrb[0].mxu0
        %v1676 = vpop.f32.mrb[0].mxu0
        %v1677 = vpop.f32.mrb[0].mxu0
        %1678 = vdwg.mxu0
        %1679 = vrot.lane.b32.xlu0 %v822, 40
        %v1680 = vpop.permute.xlu0 %1679
        %v1682 = vsel %vm826, %v1630, 0
        %v1685 = vsel %vm951, %v1680, 0
        %1687 = vmatprep.subr.bf16.mxu0 0
        %1688 = vmatpush1.bf16.msra.mxu0 %v1685
        %1689 = vmatprep.subr.bf16.mxu0 0
        %1690 = vmatpush1.bf16.msra.mxu0 0
        %1691 = vmatprep.subr.bf16.mxu0 0
        %1692 = vmatpush1.bf16.msra.mxu0 0
        %1693 = vmatprep.subr.bf16.mxu0 0
        %1694 = vmatpush1.bf16.msra.mxu0 0
        %1695 = vmatprep.subr.bf16.mxu0 0
        %1696 = vmatpush1.bf16.msra.mxu0 0
        %1697 = vmatprep.subr.bf16.mxu0 0
        %1698 = vmatpush1.bf16.msra.mxu0 0
        %1699 = vmatprep.subr.bf16.mxu0 0
        %1700 = vmatpush1.bf16.msra.mxu0 0
        %1701 = vmatprep.subr.bf16.mxu0 0
        %1702 = vmatpush1.bf16.msra.mxu0 0
        %1703 = vmatprep.subr.bf16.mxu0 0
        %1704 = vmatpush1.bf16.msra.mxu0 0
        %1705 = vmatprep.subr.bf16.mxu0 0
        %1706 = vmatpush1.bf16.msra.mxu0 0
        %1707 = vmatprep.subr.bf16.mxu0 0
        %1708 = vmatpush1.bf16.msra.mxu0 0
        %1709 = vmatprep.subr.bf16.mxu0 0
        %1710 = vmatpush1.bf16.msra.mxu0 0
        %1711 = vmatprep.subr.bf16.mxu0 0
        %1712 = vmatpush1.bf16.msra.mxu0 0
        %1713 = vmatprep.subr.bf16.mxu0 0
        %1714 = vmatpush1.bf16.msra.mxu0 0
        %1715 = vmatprep.subr.bf16.mxu0 0
        %1716 = vmatpush1.bf16.msra.mxu0 0
        %1717 = vmatprep.subr.bf16.mxu0 0
        %1718 = vmatpush1.bf16.msra.mxu0 0
        %1719 = vmatprep.mubr.bf16.mxu0 0
        %1720 = vmatmul.mubr.bf16.gmra.mrb[0].mxu0 %v1682
        %v1721 = vpop.f32.mrb[0].mxu0
        %v1722 = vadd.f32 0.0, %v1721
        %v1723 = vpop.f32.mrb[0].mxu0
        %v1724 = vpop.f32.mrb[0].mxu0
        %v1725 = vpop.f32.mrb[0].mxu0
        %1726 = vdwg.mxu0
        %1729 = vrot.lane.b32.xlu0 %v1674, 24
        %v1730 = vpop.permute.xlu0 %1729
        %1731 = vrot.lane.b32.xlu0 %v1722, 24
        %v1732 = vpop.permute.xlu0 %1731
        %vm1735 = vcmask 261312
        %1736 = vst.msk [vmem:[#allocation3] sm:$0xff] %vm1735, %v1730
        %1737 = vst.msk [vmem:[#allocation3 + $0x8] sm:$0xff] %vm1735, %v1732
        %v1738 = vld [vmem:[#allocation3] sm:$0xff]
        %v1739 = vld [vmem:[#allocation3 + $0x8] sm:$0xff]
        %v1740 = vpack.c.bf16 %v1739, %v1738
        %v1741 = vld [vmem:[%s648] sm:$0xf]
        %v1742 = vld [vmem:[%s648 + $0x4] sm:$0xf]
        %v1743 = vld [vmem:[%s648 + $0x8] sm:$0xf]
        %v1744 = vld [vmem:[%s648 + $0xc] sm:$0xf]
        %v1745 = vld [vmem:[%s651] sm:$0x1]
        %v1747 = vlaneseq
        %v1748 = vshrl.u32 %v1747, 7
        %v1749 = vsub.s32 0, %v1748
        %v1750 = vrot.slane %v1745, %v1749
        %v1756 = vunpack.c.l.b16 %v1741
        %v1757 = vunpack.c.l.b16 %v1742
        %v1758 = vunpack.c.l.b16 %v1743
        %v1759 = vunpack.c.l.b16 %v1744
        %v1760 = vpack.c.b16 %v1757, %v1756
        %v1761 = vpack.c.b16 %v1759, %v1758
        %v1765 = vsel %vm709, %v1740, 0
        %1767 = vmatprep.subr.bf16.mxu0 0
        %1768 = vmatpush1.bf16.msra.mxu0 %v1760
        %1769 = vmatprep.subr.bf16.mxu0 0
        %1770 = vmatpush1.bf16.msra.mxu0 %v1761
        %1771 = vmatprep.subr.bf16.mxu0 0
        %1772 = vmatpush1.bf16.msra.mxu0 0
        %1773 = vmatprep.subr.bf16.mxu0 0
        %1774 = vmatpush1.bf16.msra.mxu0 0
        %1775 = vmatprep.subr.bf16.mxu0 0
        %1776 = vmatpush1.bf16.msra.mxu0 0
        %1777 = vmatprep.subr.bf16.mxu0 0
        %1778 = vmatpush1.bf16.msra.mxu0 0
        %1779 = vmatprep.subr.bf16.mxu0 0
        %1780 = vmatpush1.bf16.msra.mxu0 0
        %1781 = vmatprep.subr.bf16.mxu0 0
        %1782 = vmatpush1.bf16.msra.mxu0 0
        %1783 = vmatprep.subr.bf16.mxu0 0
        %1784 = vmatpush1.bf16.msra.mxu0 0
        %1785 = vmatprep.subr.bf16.mxu0 0
        %1786 = vmatpush1.bf16.msra.mxu0 0
        %1787 = vmatprep.subr.bf16.mxu0 0
        %1788 = vmatpush1.bf16.msra.mxu0 0
        %1789 = vmatprep.subr.bf16.mxu0 0
        %1790 = vmatpush1.bf16.msra.mxu0 0
        %1791 = vmatprep.subr.bf16.mxu0 0
        %1792 = vmatpush1.bf16.msra.mxu0 0
        %1793 = vmatprep.subr.bf16.mxu0 0
        %1794 = vmatpush1.bf16.msra.mxu0 0
        %1795 = vmatprep.subr.bf16.mxu0 0
        %1796 = vmatpush1.bf16.msra.mxu0 0
        %1797 = vmatprep.subr.bf16.mxu0 0
        %1798 = vmatpush1.bf16.msra.mxu0 0
        %1799 = vmatprep.mubr.bf16.mxu0 0
        %1800 = vmatmul.mubr.bf16.gmra.mrb[0].mxu0 %v1765
        %v1801 = vpop.f32.mrb[0].mxu0
        %v1802 = vadd.f32 %v1750, %v1801
        %v1803 = vpop.f32.mrb[0].mxu0
        %v1804 = vpop.f32.mrb[0].mxu0
        %v1805 = vadd.f32 %v1750, %v1804
        %v1806 = vpop.f32.mrb[0].mxu0
        %1807 = vdwg.mxu0
        %v1808 = vadd.f32 %v705, %v1802
        %v1809 = vadd.f32 %v706, %v1805
        %v1810 = vld [vmem:[%s654] sm:$0x1]
        %v1811 = vld [vmem:[%s657] sm:$0x1]
        %v1812 = vsel %vm709, %v1808, 0.0
        %1813 = vadd.xlane.f32.xlu0 %v1812
        %v1814 = vpop.xlane.xlu0 %1813
        %v1815 = vsel %vm709, %v1809, 0.0
        %1816 = vadd.xlane.f32.xlu0 %v1815
        %v1817 = vpop.xlane.xlu0 %1816
        %v1818 = vmul.f32 %v1814, %v716
        %v1819 = vmul.f32 %v1817, %v716
        %v1820 = vsub.f32 %v1808, %v1818
        %v1821 = vsub.f32 %v1809, %v1819
        %v1822 = vmul.f32 %v1820, %v1820
        %v1823 = vmul.f32 %v1821, %v1821
        %v1824 = vsel %vm709, %v1822, 0.0
        %1825 = vadd.xlane.f32.xlu0 %v1824
        %v1826 = vpop.xlane.xlu0 %1825
        %v1827 = vsel %vm709, %v1823, 0.0
        %1828 = vadd.xlane.f32.xlu0 %v1827
        %v1829 = vpop.xlane.xlu0 %1828
        %v1830 = vmul.f32 %v1826, %v716
        %v1831 = vmul.f32 %v1829, %v716
        %v1832 = vadd.f32 %v1830, 1e-05
        %v1833 = vadd.f32 %v1831, 1e-05
        %v1834 = vrsqrt.pop %v1832
        %v1835 = vrsqrt.pop %v1833
        %v1836 = vmul.f32 %v1820, %v1834
        %v1837 = vmul.f32 %v1821, %v1835
        %v1839 = vlaneseq
        %v1840 = vshrl.u32 %v1839, 7
        %v1841 = vsub.s32 0, %v1840
        %v1842 = vrot.slane %v1810, %v1841
        %v1844 = vmul.f32 %v1836, %v1842
        %v1845 = vmul.f32 %v1837, %v1842
        %v1847 = vlaneseq
        %v1848 = vshrl.u32 %v1847, 7
        %v1849 = vsub.s32 0, %v1848
        %v1850 = vrot.slane %v1811, %v1849
        %v1852 = vadd.f32 %v1844, %v1850
        %v1853 = vadd.f32 %v1845, %v1850
        %v1854 = vpack.c.bf16 %v1853, %v1852
        %1855 = vst.msk [vmem:[#allocation4] sm:$0xff] %vm709, %v1854
        %v1856 = vld [vmem:[%s684] sm:$0x1]
        %v1858 = vlaneseq
        %v1859 = vshrl.u32 %v1858, 7
        %v1860 = vsub.s32 0, %v1859
        %v1861 = vrot.slane %v1856, %v1860
        %v1863 = vadd.f32 %v1808, %v1861
        %v1864 = vadd.f32 %v1809, %v1861
        %1865 = vst.msk [vmem:[#allocation5] sm:$0xff] %vm709, %v1863
        %1866 = vst.msk [vmem:[#allocation5 + $0x8] sm:$0xff] %vm709, %v1864
      $region80: #{transformer_forward.1} parent=71 // pred_fallthru
        _
      %v1867 = vld [vmem:[#allocation4] sm:$0xff]
      %v1868 = vld [vmem:[%s665] sm:$0xf]
      %v1869 = vld [vmem:[%s665 + $0x4] sm:$0xf]
      %v1870 = vld [vmem:[%s665 + $0x8] sm:$0xf]
      %v1871 = vld [vmem:[%s665 + $0xc] sm:$0xf]
      %v1872 = vld [vmem:[%s671] sm:$0x1]
      %v1874 = vlaneseq
      %v1875 = vshrl.u32 %v1874, 7
      %v1876 = vsub.s32 0, %v1875
      %v1877 = vrot.slane %v1872, %v1876
      %v1883 = vunpack.c.l.b16 %v1868
      %v1884 = vunpack.c.l.b16 %v1869
      %v1885 = vunpack.c.l.b16 %v1870
      %v1886 = vunpack.c.l.b16 %v1871
      %v1887 = vpack.c.b16 %v1884, %v1883
      %v1888 = vpack.c.b16 %v1886, %v1885
      %vm1891 = vcmask 261120
      %v1893 = vsel %vm1891, %v1867, 0
      %1895 = vmatprep.subr.bf16.mxu0 0
      %1896 = vmatpush1.bf16.msra.mxu0 %v1887
      %1897 = vmatprep.subr.bf16.mxu0 0
      %1898 = vmatpush1.bf16.msra.mxu0 %v1888
      %1899 = vmatprep.subr.bf16.mxu0 0
      %1900 = vmatpush1.bf16.msra.mxu0 0
      %1901 = vmatprep.subr.bf16.mxu0 0
      %1902 = vmatpush1.bf16.msra.mxu0 0
      %1903 = vmatprep.subr.bf16.mxu0 0
      %1904 = vmatpush1.bf16.msra.mxu0 0
      %1905 = vmatprep.subr.bf16.mxu0 0
      %1906 = vmatpush1.bf16.msra.mxu0 0
      %1907 = vmatprep.subr.bf16.mxu0 0
      %1908 = vmatpush1.bf16.msra.mxu0 0
      %1909 = vmatprep.subr.bf16.mxu0 0
      %1910 = vmatpush1.bf16.msra.mxu0 0
      %1911 = vmatprep.subr.bf16.mxu0 0
      %1912 = vmatpush1.bf16.msra.mxu0 0
      %1913 = vmatprep.subr.bf16.mxu0 0
      %1914 = vmatpush1.bf16.msra.mxu0 0
      %1915 = vmatprep.subr.bf16.mxu0 0
      %1916 = vmatpush1.bf16.msra.mxu0 0
      %1917 = vmatprep.subr.bf16.mxu0 0
      %1918 = vmatpush1.bf16.msra.mxu0 0
      %1919 = vmatprep.subr.bf16.mxu0 0
      %1920 = vmatpush1.bf16.msra.mxu0 0
      %1921 = vmatprep.subr.bf16.mxu0 0
      %1922 = vmatpush1.bf16.msra.mxu0 0
      %1923 = vmatprep.subr.bf16.mxu0 0
      %1924 = vmatpush1.bf16.msra.mxu0 0
      %1925 = vmatprep.subr.bf16.mxu0 0
      %1926 = vmatpush1.bf16.msra.mxu0 0
      %1927 = vmatprep.mubr.bf16.mxu0 0
      %1928 = vmatmul.mubr.bf16.gmra.mrb[0].mxu0 %v1893
      %v1929 = vpop.f32.mrb[0].mxu0
      %v1930 = vadd.f32 %v1877, %v1929
      %v1931 = vpop.f32.mrb[0].mxu0
      %v1932 = vpop.f32.mrb[0].mxu0
      %v1933 = vadd.f32 %v1877, %v1932
      %v1934 = vpop.f32.mrb[0].mxu0
      %1935 = vdwg.mxu0
      %v1936 = vmul.f32 %v1930, 1.702
      %v1937 = vmul.f32 %v1933, 1.702
      %v1938 = vxor.u32 %v1936, 2147483648
      %v1939 = vxor.u32 %v1937, 2147483648
      %v1940 = vmul.f32 %v1938, 1.442695
      %v1941 = vpow.pop %v1940
      %v1942 = vmul.f32 %v1939, 1.442695
      %v1943 = vpow.pop %v1942
      %v1944 = vadd.f32 %v1941, 1.0
      %v1945 = vadd.f32 %v1943, 1.0
      %v1946 = vrcp.pop %v1944
      %v1947 = vmul.f32 1.0, %v1946
      %v1948 = vrcp.pop %v1945
      %v1949 = vmul.f32 1.0, %v1948
      %v1950 = vmul.f32 %v1930, %v1947
      %v1951 = vmul.f32 %v1933, %v1949
      %v1952 = vld [vmem:[#allocation5] sm:$0xff]
      %v1953 = vld [vmem:[#allocation5 + $0x8] sm:$0xff]
      %v1954 = vpack.c.bf16 %v1951, %v1950
      %v1955 = vld [vmem:[%s680] sm:$0xf]
      %v1956 = vld [vmem:[%s680 + $0x4] sm:$0xf]
      %v1957 = vld [vmem:[%s680 + $0x8] sm:$0xf]
      %v1958 = vld [vmem:[%s680 + $0xc] sm:$0xf]
      %v1959 = vld [vmem:[%s680 + $0x10] sm:$0xf]
      %v1960 = vld [vmem:[%s680 + $0x14] sm:$0xf]
      %v1961 = vld [vmem:[%s680 + $0x18] sm:$0xf]
      %v1962 = vld [vmem:[%s680 + $0x1c] sm:$0xf]
      %v1963 = vld [vmem:[%s680 + $0x20] sm:$0xf]
      %v1964 = vld [vmem:[%s680 + $0x24] sm:$0xf]
      %v1965 = vld [vmem:[%s680 + $0x28] sm:$0xf]
      %v1966 = vld [vmem:[%s680 + $0x2c] sm:$0xf]
      %v1967 = vld [vmem:[%s680 + $0x30] sm:$0xf]
      %v1968 = vld [vmem:[%s680 + $0x34] sm:$0xf]
      %v1969 = vld [vmem:[%s680 + $0x38] sm:$0xf]
      %v1970 = vld [vmem:[%s680 + $0x3c] sm:$0xf]
      %v1987 = vunpack.c.l.b16 %v1955
      %v1988 = vunpack.c.l.b16 %v1956
      %v1989 = vunpack.c.l.b16 %v1957
      %v1990 = vunpack.c.l.b16 %v1958
      %v1991 = vunpack.c.l.b16 %v1959
      %v1992 = vunpack.c.l.b16 %v1960
      %v1993 = vunpack.c.l.b16 %v1961
      %v1994 = vunpack.c.l.b16 %v1962
      %v1995 = vunpack.c.l.b16 %v1963
      %v1996 = vunpack.c.l.b16 %v1964
      %v1997 = vunpack.c.l.b16 %v1965
      %v1998 = vunpack.c.l.b16 %v1966
      %v1999 = vunpack.c.l.b16 %v1967
      %v2000 = vunpack.c.l.b16 %v1968
      %v2001 = vunpack.c.l.b16 %v1969
      %v2002 = vunpack.c.l.b16 %v1970
      %v2003 = vpack.c.b16 %v1988, %v1987
      %v2004 = vpack.c.b16 %v1990, %v1989
      %v2005 = vpack.c.b16 %v1992, %v1991
      %v2006 = vpack.c.b16 %v1994, %v1993
      %v2007 = vpack.c.b16 %v1996, %v1995
      %v2008 = vpack.c.b16 %v1998, %v1997
      %v2009 = vpack.c.b16 %v2000, %v1999
      %v2010 = vpack.c.b16 %v2002, %v2001
      %2019 = vmatprep.subr.bf16.mxu0 0
      %2020 = vmatpush1.bf16.msra.mxu0 %v2003
      %2021 = vmatprep.subr.bf16.mxu0 0
      %2022 = vmatpush1.bf16.msra.mxu0 %v2004
      %2023 = vmatprep.subr.bf16.mxu0 0
      %2024 = vmatpush1.bf16.msra.mxu0 %v2005
      %2025 = vmatprep.subr.bf16.mxu0 0
      %2026 = vmatpush1.bf16.msra.mxu0 %v2006
      %2027 = vmatprep.subr.bf16.mxu0 0
      %2028 = vmatpush1.bf16.msra.mxu0 %v2007
      %2029 = vmatprep.subr.bf16.mxu0 0
      %2030 = vmatpush1.bf16.msra.mxu0 %v2008
      %2031 = vmatprep.subr.bf16.mxu0 0
      %2032 = vmatpush1.bf16.msra.mxu0 %v2009
      %2033 = vmatprep.subr.bf16.mxu0 0
      %2034 = vmatpush1.bf16.msra.mxu0 %v2010
      %2035 = vmatprep.subr.bf16.mxu0 0
      %2036 = vmatpush1.bf16.msra.mxu0 0
      %2037 = vmatprep.subr.bf16.mxu0 0
      %2038 = vmatpush1.bf16.msra.mxu0 0
      %2039 = vmatprep.subr.bf16.mxu0 0
      %2040 = vmatpush1.bf16.msra.mxu0 0
      %2041 = vmatprep.subr.bf16.mxu0 0
      %2042 = vmatpush1.bf16.msra.mxu0 0
      %2043 = vmatprep.subr.bf16.mxu0 0
      %2044 = vmatpush1.bf16.msra.mxu0 0
      %2045 = vmatprep.subr.bf16.mxu0 0
      %2046 = vmatpush1.bf16.msra.mxu0 0
      %2047 = vmatprep.subr.bf16.mxu0 0
      %2048 = vmatpush1.bf16.msra.mxu0 0
      %2049 = vmatprep.subr.bf16.mxu0 0
      %2050 = vmatpush1.bf16.msra.mxu0 0
      %2051 = vmatprep.mubr.bf16.mxu0 0
      %2052 = vmatmul.mubr.bf16.gmra.mrb[0].mxu0 %v1954
      %v2053 = vpop.f32.mrb[0].mxu0
      %v2054 = vadd.f32 0.0, %v2053
      %v2055 = vpop.f32.mrb[0].mxu0
      %v2056 = vpop.f32.mrb[0].mxu0
      %v2057 = vadd.f32 0.0, %v2056
      %v2058 = vpop.f32.mrb[0].mxu0
      %2059 = vdwg.mxu0
      %v2060 = vadd.f32 %v1952, %v2054
      %v2061 = vadd.f32 %v1953, %v2057
      %2062 = vst.msk [vmem:[#allocation5] sm:$0xff] %vm1891, %v2060
      %2063 = vst.msk [vmem:[#allocation5 + $0x8] sm:$0xff] %vm1891, %v2061
      // Predicated region
      $region81: #{transformer_forward.1} parent=71 // pred_check
        %p2064 = pneg %p691
      $region82: #{transformer_forward.1} parent=71 // pred_check_branch
        %2066 = sbr.rel (%p2064) target = $region84
      $region83: #{transformer_forward.1} parent=71 // pred_region
        %v2067 = vld [vmem:[#allocation5] sm:$0xff]
        %v2068 = vld [vmem:[#allocation5 + $0x8] sm:$0xff]
        %2069 = vst.msk [vmem:[#allocation2] sm:$0xff] %vm1891, %v2067
        %2070 = vst.msk [vmem:[#allocation2 + $0x8] sm:$0xff] %vm1891, %v2068
      $region84: #{transformer_forward.1} parent=71 // pred_fallthru
        _
      %p2071 = scmp.eq.s32.totalorder %s30, 1
      %p2072 = pnand %p691, %p2071
      %p2073 = pneg %p2072
      // Predicated region
      $region85: #{transformer_forward.1} parent=71 // pred_check
        _
      $region86: #{transformer_forward.1} parent=71 // pred_check_branch
        %2075 = sbr.rel (%p2072) target = $region88
      $region87: #{transformer_forward.1} parent=71 // pred_region
        %v2076 = vld [vmem:[#allocation5] sm:$0xff]
        %v2077 = vld [vmem:[#allocation5 + $0x8] sm:$0xff]
        %2078 = vst.msk [vmem:[%s689] sm:$0xff] %vm1891, %v2076
        %2079 = vst.msk [vmem:[%s689 + $0x8] sm:$0xff] %vm1891, %v2077
      $region88: #{transformer_forward.1} parent=71 // pred_fallthru
        _
      %p2080 = scmp.lt.s32.totalorder %s29, 0
      %s2081 = scalar_select %p2080, %s29, 0
      %s2082 = smul.addr %s2081, 2
      %s2083 = smul.addr %s2082, 8
      %s2084 = scalar_lea.vmem %s13, %s2083
      // Predicated region
      $region89: #{transformer_forward.1} parent=71 // pred_check
        %p2085 = pneg %p405
      $region90: #{transformer_forward.1} parent=71 // pred_check_branch
        %2087 = sbr.rel (%p2085) target = $region92
      $region91: #{transformer_forward.1} parent=71 // pred_region
        _
      $region92: #{transformer_forward.1} parent=71 // pred_fallthru
        _
      // Predicated region
      $region93: #{transformer_forward.1} parent=71 // pred_check
        %p2088 = pneg %p405
      $region94: #{transformer_forward.1} parent=71 // pred_check_branch
        %2090 = sbr.rel (%p2088) target = $region96
      $region95: #{transformer_forward.1} parent=71 // pred_region
        %p2091 = scmp.lt.s32.totalorder %s29, 0
        %s2092 = scalar_select %p2091, %s29, 0
        %s2093 = smul.addr %s2092, 2
        %s2094 = smul.addr %s2093, 8
        %s2095 = scalar_lea.vmem %s13, %s2094
      $region96: #{transformer_forward.1} parent=71 // pred_fallthru
        _
    $region72: #{transformer_forward.1} parent=5 // pred_fallthru
      _
    %p2096 = scmp.le.s32.totalorder 2, %s19
    // Predicated region
    $region97: #{transformer_forward.1} parent=5 // pred_check
      %p2097 = pneg %p2096
    $region98: #{transformer_forward.1} parent=5 // pred_check_branch
      %2099 = sbr.rel (%p2097) target = $region100
    $region99: #{transformer_forward.1} parent=5 // pred_region
      %s2100 = ssub.s32 %s19, 2
    $region100: #{transformer_forward.1} parent=5 // pred_fallthru
      _
  $region6: #{transformer_forward.1} parent=0 // loop_footer
    %s23 = sadd.s32 1, %s19
  $region7: #{transformer_forward.1} parent=0 // loop_footer_branch
    %18 = sbr.rel target = $region3
  $region8: #{transformer_forward.1} parent=0 // loop_exit
    _

</llo_original>
